<compile_context>
chip_gen: v7x
topology: tpu7x:2x2x1
jax: 0.10.0
libtpu: 0.0.40
codegen_flags: <defaults>
</compile_context>

<pallas_src>
import jax
import jax.numpy as jnp
from jax.experimental import pallas as pl
from jax.experimental.pallas import tpu as pltpu


# ---------------- Config (mirrors the PyTorch `config`) ----------------
class Config:
    batch_size = 2
    lr = 1e-3
    log_mode = True
    event_class = 10
    emb_dim = 7          # LSTM input size = 1 + emb_dim = 8
    dropout = 0.0        # emb_drop treated as identity (eval mode)
    hid_dim = 32
    mlp_dim = 32
    mlp_layer = 2        # => mlp_layer - 1 = 1 extra hidden Linear in IntensityNet


# ---------------- Fused Pallas kernel ----------------
def make_gtpp_kernel(n_hidden, T, B, Bp, H, M):
    """Embedding gather + LSTM recurrence + IntensityNet fwd + analytic
    d(int_lmbda)/d(target_time), all in one kernel."""

    def kernel(*refs):
        (ev_ref, tm_ref, gtab_ref, wtime_ref, whh_ref, sc_ref,
         w2h_ref, w2t_ref, b2_ref) = refs[:9]
        idx = 9
        hidden = []
        for _ in range(n_hidden):
            hidden.append((refs[idx], refs[idx + 1]))
            idx += 2
        w3_ref, b3_ref = refs[idx], refs[idx + 1]
        out_ref = refs[idx + 2]

        whh = whh_ref[...]                     # [H, 4H]  bf16
        wtime = wtime_ref[...]                 # [1, 4H]  f32 (time row of W_ih)

        # Hoisted constants (iotas / masks built once, not per step).
        lane4 = jax.lax.broadcasted_iota(jnp.int32, (Bp, 4 * H), 1)
        row4 = jax.lax.broadcasted_iota(jnp.int32, (Bp, 4 * H), 0)
        g_block = (lane4 >= 2 * H) & (lane4 < 3 * H)      # tanh-gate lanes

        h = jnp.zeros((Bp, H), jnp.float32)
        c = jnp.zeros((Bp, H), jnp.float32)

        # ---- LSTM recurrence (embedding gather + input proj fused per step) ----
        # TODO(synk): at T=7 a static unroll is right; for long sequences switch
        # to a partially-unrolled lax.fori_loop to bound code size / live ranges.
        for t in range(T):
            # x[t] @ W_ih + b without materializing x: gather the per-event gate
            # row (precomputed at param time) and add the time contribution.
            xw_t = jnp.zeros((Bp, 4 * H), jnp.float32)
            for b in range(B):
                ev = ev_ref[b, t]                          # SMEM scalar (int32)
                tm = tm_ref[b, t]                          # SMEM scalar (f32)
                contrib = gtab_ref[ev] + tm * wtime        # [1, 4H]
                xw_t = jnp.where(row4 == b, contrib, xw_t)
            gates = xw_t + jnp.dot(h.astype(jnp.bfloat16), whh,
                                   preferred_element_type=jnp.float32)
            # Single EUP pass: tanh(x) = 2*sigmoid(2x) - 1 on the g lanes only.
            scaled = jnp.where(g_block, gates + gates, gates)
            s = jax.nn.sigmoid(scaled)
            act = jnp.where(g_block, s + s - 1.0, s)
            i = act[:, 0 * H:1 * H]
            f = act[:, 1 * H:2 * H]
            g = act[:, 2 * H:3 * H]
            o = act[:, 3 * H:4 * H]
            c = f * c + i * g
            h = o * jnp.tanh(c)

        # ---- IntensityNet + analytic forward-mode derivative w.r.t. tt ----
        w1 = sc_ref[0]                        # linear1 weight (>= 0 after clamp)
        b1 = sc_ref[1]                        # linear1 bias
        rowv = jax.lax.broadcasted_iota(jnp.int32, (Bp, 1), 0)
        tt = jnp.ones((Bp, 1), jnp.float32)   # padded rows get tt = 1.0
        for b in range(B):
            tt = jnp.where(rowv == b, tm_ref[b, T], tt)    # time_seq[:, -1]
        t_lin = tt * w1 + b1                  # d t_lin / d tt = w1

        # linear2 on concat([h, t]) without materializing the concat.
        w2t = w2t_ref[...]                    # [1, M]
        a = (jnp.dot(h.astype(jnp.bfloat16), w2h_ref[...],
                     preferred_element_type=jnp.float32)
             + t_lin * w2t + b2_ref[...])     # [Bp, M]
        out = jnp.tanh(a)
        dout = (1.0 - out * out) * (w1 * w2t)

        # Stack value/tangent rows -> one MXU push per layer.
        V = jnp.concatenate([out, dout], axis=0)           # [2Bp, M]
        for wm_ref, bm_ref in hidden:
            A = jnp.dot(V.astype(jnp.bfloat16), wm_ref[...],
                        preferred_element_type=jnp.float32)
            val = jnp.tanh(A[:Bp] + bm_ref[...])
            tan = (1.0 - val * val) * A[Bp:]
            V = jnp.concatenate([val, tan], axis=0)

        Y = jnp.dot(V.astype(jnp.bfloat16), w3_ref[...],
                    preferred_element_type=jnp.float32)    # [2Bp, 1]
        y = Y[:Bp] + b3_ref[...]
        dy = Y[Bp:]

        s1 = jax.nn.softplus(y)               # Softplus inside linear3 Sequential
        ds1 = jax.nn.sigmoid(y) * dy
        s2 = jax.nn.softplus(s1)              # extra F.softplus in forward
        ds2 = jax.nn.sigmoid(s1) * ds1

        # Means over the real batch only (rows >= B are sublane padding).
        valid = rowv < B
        inv_b = 1.0 / float(B)
        int_lmbda = jnp.sum(jnp.where(valid, s2, 0.0), keepdims=True) * inv_b
        lmbda = ds2 * inv_b                   # [Bp, 1] = d int_lmbda / d tt
        log_lmbda = jnp.sum(jnp.where(valid, jnp.log(lmbda + 1e-10), 0.0),
                            keepdims=True) * inv_b
        nll = int_lmbda - log_lmbda

        # Single lane-dense (Bp,128) output slab (one unmasked store):
        #   lane 0 : per-sample lmbda (rows 0..B-1)
        #   lane 1 : row 0 = nll, row 1 = log_lmbda, row 2 = int_lmbda
        row_o = jax.lax.broadcasted_iota(jnp.int32, (Bp, 128), 0)
        lane_o = jax.lax.broadcasted_iota(jnp.int32, (Bp, 128), 1)
        scalars = jnp.where(row_o == 0, nll,
                            jnp.where(row_o == 1, log_lmbda,
                                      jnp.where(row_o == 2, int_lmbda, 0.0)))
        out_ref[...] = jnp.where(lane_o == 0, lmbda,
                                 jnp.where(lane_o == 1, scalars, 0.0))

    return kernel


# ---------------- Parameter init (deterministic, synthetic) ----------------
def init_params(cfg, key):
    E, H, M = cfg.emb_dim, cfg.hid_dim, cfg.mlp_dim
    D = 1 + E
    keys = jax.random.split(key, 12)

    def u(k, shape, s=0.3):
        return jax.random.uniform(k, shape, jnp.float32, -s, s)

    n_hidden = cfg.mlp_layer - 1
    hk = jax.random.split(keys[8], max(n_hidden, 1) * 2)
    hidden = [(u(hk[2 * i], (M, M)), u(hk[2 * i + 1], (1, M)))
              for i in range(n_hidden)]

    return {
        "emb_table": u(keys[0], (cfg.event_class, E), 1.0),
        "w_ih": u(keys[1], (D, 4 * H)),
        "w_hh": u(keys[2], (H, 4 * H)),
        "b_lstm": u(keys[3], (1, 4 * H)),                 # b_ih + b_hh folded
        "w1": jax.random.uniform(keys[4], (), jnp.float32, 0.05, 0.5),
        "b1": jax.random.uniform(keys[5], (), jnp.float32, 0.0, 0.3),
        "w2": u(keys[6], (H + 1, M)),
        "b2": u(keys[7], (1, M)),
        "hidden": hidden,
        "w3": u(keys[9], (M, 1)),
        "b3": u(keys[10], (1, 1)),
    }


# ---------------- One-time parameter preprocessing (out of per-call path) ----
def prepare_params(params):
    """Clamp IntensityNet params (p.data *= p.data >= 0), precompute the
    per-event LSTM gate table (embedding folded into W_ih), split w2, and cast
    MXU operands to bf16.  Done once per parameter update, not per forward."""
    H = params["w_hh"].shape[0]
    E = params["emb_table"].shape[1]
    clamp = lambda p: jnp.maximum(p.astype(jnp.float32), 0.0)

    w_ih = params["w_ih"].astype(jnp.float32)                       # [D, 4H]
    # gate table: emb_table @ W_ih[:E] + (b_ih + b_hh)  ->  [C, 1, 4H]
    gtab = (params["emb_table"].astype(jnp.float32) @ w_ih[:E]
            + params["b_lstm"].astype(jnp.float32))[:, None, :]
    wtime = w_ih[E:E + 1]                                           # [1, 4H]

    w2 = clamp(params["w2"])
    return {
        "gtab": gtab,
        "wtime": wtime,
        "whh": params["w_hh"].astype(jnp.bfloat16),
        "sc": clamp(jnp.stack([params["w1"], params["b1"]])),       # (2,) SMEM
        "w2h": w2[:H].astype(jnp.bfloat16),
        "w2t": w2[H:H + 1],
        "b2": clamp(params["b2"]),
        "hidden": [(clamp(w).astype(jnp.bfloat16), clamp(b))
                   for (w, b) in params["hidden"]],
        "w3": clamp(params["w3"]).astype(jnp.bfloat16),
        "b3": clamp(params["b3"]),
    }


# ---------------- Forward wrapper (no per-call XLA glue) ----------------
def gtpp_forward(prepared, time_seq, event_seq):
    # TODO(synk): nn.Dropout(emb) treated as identity (eval mode / p ignored).
    B, S = time_seq.shape
    T = S - 1
    H = prepared["whh"].shape[0]
    M = prepared["b2"].shape[1]
    Bp = max(8, ((B + 7) // 8) * 8)          # sublane-padded batch
    n_hidden = len(prepared["hidden"])
    flat_hidden = [a for wb in prepared["hidden"] for a in wb]

    vmem = pl.BlockSpec(memory_space=pltpu.MemorySpace.VMEM)
    smem = pl.BlockSpec(memory_space=pltpu.MemorySpace.SMEM)
    kernel = make_gtpp_kernel(n_hidden, T, B, Bp, H, M)
    in_specs = ([smem, smem, vmem, vmem, vmem, smem, vmem, vmem, vmem]
                + [vmem] * (2 * n_hidden) + [vmem, vmem])

    slab = pl.pallas_call(
        kernel,
        out_shape=jax.ShapeDtypeStruct((Bp, 128), jnp.float32),
        in_specs=in_specs,
        out_specs=vmem,
    )(event_seq.astype(jnp.int32), time_seq.astype(jnp.float32),
      prepared["gtab"], prepared["wtime"], prepared["whh"], prepared["sc"],
      prepared["w2h"], prepared["w2t"], prepared["b2"],
      *flat_hidden, prepared["w3"], prepared["b3"])

    nll = slab[0, 1]
    log_lmbda = slab[1, 1]
    int_lmbda = slab[2, 1]
    lmbda = slab[:B, 0]
    return [nll, log_lmbda, int_lmbda, lmbda]


if __name__ == "__main__":
    cfg = Config()
    key = jax.random.PRNGKey(0)
    kp, kt, ke = jax.random.split(key, 3)
    params = init_params(cfg, kp)
    prepared = prepare_params(params)

    B, S = cfg.batch_size, 8
    time_seq = jax.random.uniform(kt, (B, S), jnp.float32, 0.1, 2.0)
    event_seq = jax.random.randint(ke, (B, S), 0, cfg.event_class)

    outs = gtpp_forward(prepared, time_seq, event_seq)
    outs = jax.block_until_ready(outs)
    print("KERNEL_OK")
</pallas_src>

<mosaic_0001>
module attributes {stable_mosaic.version = 11 : i64} {
  func.func @kernel(%arg0: memref<2x8xi32, #tpu.memory_space<smem>>, %arg1: memref<2x8xf32, #tpu.memory_space<smem>>, %arg2: memref<10x1x128xf32, #tpu.memory_space<vmem>>, %arg3: memref<1x128xf32, #tpu.memory_space<vmem>>, %arg4: memref<32x128xbf16, #tpu.memory_space<vmem>>, %arg5: memref<2xf32, #tpu.memory_space<smem>>, %arg6: memref<32x32xbf16, #tpu.memory_space<vmem>>, %arg7: memref<1x32xf32, #tpu.memory_space<vmem>>, %arg8: memref<1x32xf32, #tpu.memory_space<vmem>>, %arg9: memref<32x32xbf16, #tpu.memory_space<vmem>>, %arg10: memref<1x32xf32, #tpu.memory_space<vmem>>, %arg11: memref<32x1xbf16, #tpu.memory_space<vmem>>, %arg12: memref<1x1xf32, #tpu.memory_space<vmem>>, %arg13: memref<8x128xf32, #tpu.memory_space<vmem>>) attributes {dimension_semantics = [], scalar_prefetch = 0 : i64, scratch_operands = 0 : i64, tpu.core_type = #tpu.core_type<tc>} {
    %c0 = arith.constant 0 : index
    %c0_0 = arith.constant 0 : index
    %0 = vector.load %arg4[%c0, %c0_0] : memref<32x128xbf16, #tpu.memory_space<vmem>>, vector<32x128xbf16>
    %c0_1 = arith.constant 0 : index
    %c0_2 = arith.constant 0 : index
    %1 = vector.load %arg3[%c0_1, %c0_2] : memref<1x128xf32, #tpu.memory_space<vmem>>, vector<1x128xf32>
    %2 = tpu.iota {dimensions = array<i32: 1>} : vector<8x128xi32>
    %3 = tpu.iota {dimensions = array<i32: 0>} : vector<8x128xi32>
    %c64_i32 = arith.constant 64 : i32
    %4 = vector.broadcast %c64_i32 : i32 to vector<8x128xi32>
    %5 = arith.cmpi sge, %2, %4 : vector<8x128xi32>
    %c96_i32 = arith.constant 96 : i32
    %6 = vector.broadcast %c96_i32 : i32 to vector<8x128xi32>
    %7 = arith.cmpi slt, %2, %6 : vector<8x128xi32>
    %8 = arith.andi %5, %7 : vector<8x128xi1>
    %cst = arith.constant 0.000000e+00 : f32
    %9 = vector.broadcast %cst : f32 to vector<8x32xf32>
    %cst_3 = arith.constant 0.000000e+00 : f32
    %10 = vector.broadcast %cst_3 : f32 to vector<8x32xf32>
    %cst_4 = arith.constant 0.000000e+00 : f32
    %11 = vector.broadcast %cst_4 : f32 to vector<8x128xf32>
    %c0_5 = arith.constant 0 : index
    %c0_6 = arith.constant 0 : index
    %12 = memref.load %arg0[%c0_5, %c0_6] : memref<2x8xi32, #tpu.memory_space<smem>>
    %c0_7 = arith.constant 0 : index
    %c0_8 = arith.constant 0 : index
    %13 = memref.load %arg1[%c0_7, %c0_8] : memref<2x8xf32, #tpu.memory_space<smem>>
    %14 = arith.index_cast %12 : i32 to index
    %c0_9 = arith.constant 0 : index
    %c0_10 = arith.constant 0 : index
    %15 = vector.load %arg2[%14, %c0_9, %c0_10] : memref<10x1x128xf32, #tpu.memory_space<vmem>>, vector<1x1x128xf32>
    %16 = vector.shape_cast %15 : vector<1x1x128xf32> to vector<1x128xf32>
    %17 = vector.broadcast %13 : f32 to vector<1x128xf32>
    %18 = arith.mulf %17, %1 : vector<1x128xf32>
    %19 = arith.addf %16, %18 : vector<1x128xf32>
    %c0_i32 = arith.constant 0 : i32
    %20 = vector.broadcast %c0_i32 : i32 to vector<8x128xi32>
    %21 = arith.cmpi eq, %3, %20 : vector<8x128xi32>
    %22 = vector.shape_cast %19 : vector<1x128xf32> to vector<1x128xf32>
    %23 = vector.broadcast %22 : vector<1x128xf32> to vector<8x128xf32>
    %24 = arith.select %21, %23, %11 : vector<8x128xi1>, vector<8x128xf32>
    %c1 = arith.constant 1 : index
    %c0_11 = arith.constant 0 : index
    %25 = memref.load %arg0[%c1, %c0_11] : memref<2x8xi32, #tpu.memory_space<smem>>
    %c1_12 = arith.constant 1 : index
    %c0_13 = arith.constant 0 : index
    %26 = memref.load %arg1[%c1_12, %c0_13] : memref<2x8xf32, #tpu.memory_space<smem>>
    %27 = arith.index_cast %25 : i32 to index
    %c0_14 = arith.constant 0 : index
    %c0_15 = arith.constant 0 : index
    %28 = vector.load %arg2[%27, %c0_14, %c0_15] : memref<10x1x128xf32, #tpu.memory_space<vmem>>, vector<1x1x128xf32>
    %29 = vector.shape_cast %28 : vector<1x1x128xf32> to vector<1x128xf32>
    %30 = vector.broadcast %26 : f32 to vector<1x128xf32>
    %31 = arith.mulf %30, %1 : vector<1x128xf32>
    %32 = arith.addf %29, %31 : vector<1x128xf32>
    %c1_i32 = arith.constant 1 : i32
    %33 = vector.broadcast %c1_i32 : i32 to vector<8x128xi32>
    %34 = arith.cmpi eq, %3, %33 : vector<8x128xi32>
    %35 = vector.shape_cast %32 : vector<1x128xf32> to vector<1x128xf32>
    %36 = vector.broadcast %35 : vector<1x128xf32> to vector<8x128xf32>
    %37 = arith.select %34, %36, %24 : vector<8x128xi1>, vector<8x128xf32>
    %38 = arith.truncf %9 : vector<8x32xf32> to vector<8x32xbf16>
    %cst_16 = arith.constant dense<0.000000e+00> : vector<8x128xf32>
    %39 = tpu.matmul %38, %0, %cst_16 {dimension_numbers = #tpu.dot_dimension_numbers<[1], [0], [0], [1], [0, 0, 1, 1], [], []>} : vector<8x32xbf16>, vector<32x128xbf16>, vector<8x128xf32> -> vector<8x128xf32>
    %40 = arith.addf %37, %39 : vector<8x128xf32>
    %41 = arith.addf %40, %40 : vector<8x128xf32>
    %42 = arith.select %8, %41, %40 : vector<8x128xi1>, vector<8x128xf32>
    %43 = arith.negf %42 : vector<8x128xf32>
    %44 = math.exp %43 : vector<8x128xf32>
    %cst_17 = arith.constant 1.000000e+00 : f32
    %45 = vector.broadcast %cst_17 : f32 to vector<8x128xf32>
    %46 = arith.addf %45, %44 : vector<8x128xf32>
    %47 = arith.divf %45, %46 : vector<8x128xf32>
    %48 = arith.addf %47, %47 : vector<8x128xf32>
    %cst_18 = arith.constant 1.000000e+00 : f32
    %49 = vector.broadcast %cst_18 : f32 to vector<8x128xf32>
    %50 = arith.subf %48, %49 : vector<8x128xf32>
    %51 = arith.select %8, %50, %47 : vector<8x128xi1>, vector<8x128xf32>
    %52 = vector.extract_strided_slice %51 {offsets = [0, 0], sizes = [8, 32], strides = [1, 1]} : vector<8x128xf32> to vector<8x32xf32>
    %53 = vector.extract_strided_slice %51 {offsets = [0, 32], sizes = [8, 32], strides = [1, 1]} : vector<8x128xf32> to vector<8x32xf32>
    %54 = vector.extract_strided_slice %51 {offsets = [0, 64], sizes = [8, 32], strides = [1, 1]} : vector<8x128xf32> to vector<8x32xf32>
    %55 = vector.extract_strided_slice %51 {offsets = [0, 96], sizes = [8, 32], strides = [1, 1]} : vector<8x128xf32> to vector<8x32xf32>
    %56 = arith.mulf %53, %10 : vector<8x32xf32>
    %57 = arith.mulf %52, %54 : vector<8x32xf32>
    %58 = arith.addf %56, %57 : vector<8x32xf32>
    %59 = math.tanh %58 : vector<8x32xf32>
    %60 = arith.mulf %55, %59 : vector<8x32xf32>
    %cst_19 = arith.constant 0.000000e+00 : f32
    %61 = vector.broadcast %cst_19 : f32 to vector<8x128xf32>
    %c0_20 = arith.constant 0 : index
    %c1_21 = arith.constant 1 : index
    %62 = memref.load %arg0[%c0_20, %c1_21] : memref<2x8xi32, #tpu.memory_space<smem>>
    %c0_22 = arith.constant 0 : index
    %c1_23 = arith.constant 1 : index
    %63 = memref.load %arg1[%c0_22, %c1_23] : memref<2x8xf32, #tpu.memory_space<smem>>
    %64 = arith.index_cast %62 : i32 to index
    %c0_24 = arith.constant 0 : index
    %c0_25 = arith.constant 0 : index
    %65 = vector.load %arg2[%64, %c0_24, %c0_25] : memref<10x1x128xf32, #tpu.memory_space<vmem>>, vector<1x1x128xf32>
    %66 = vector.shape_cast %65 : vector<1x1x128xf32> to vector<1x128xf32>
    %67 = vector.broadcast %63 : f32 to vector<1x128xf32>
    %68 = arith.mulf %67, %1 : vector<1x128xf32>
    %69 = arith.addf %66, %68 : vector<1x128xf32>
    %c0_i32_26 = arith.constant 0 : i32
    %70 = vector.broadcast %c0_i32_26 : i32 to vector<8x128xi32>
    %71 = arith.cmpi eq, %3, %70 : vector<8x128xi32>
    %72 = vector.shape_cast %69 : vector<1x128xf32> to vector<1x128xf32>
    %73 = vector.broadcast %72 : vector<1x128xf32> to vector<8x128xf32>
    %74 = arith.select %71, %73, %61 : vector<8x128xi1>, vector<8x128xf32>
    %c1_27 = arith.constant 1 : index
    %c1_28 = arith.constant 1 : index
    %75 = memref.load %arg0[%c1_27, %c1_28] : memref<2x8xi32, #tpu.memory_space<smem>>
    %c1_29 = arith.constant 1 : index
    %c1_30 = arith.constant 1 : index
    %76 = memref.load %arg1[%c1_29, %c1_30] : memref<2x8xf32, #tpu.memory_space<smem>>
    %77 = arith.index_cast %75 : i32 to index
    %c0_31 = arith.constant 0 : index
    %c0_32 = arith.constant 0 : index
    %78 = vector.load %arg2[%77, %c0_31, %c0_32] : memref<10x1x128xf32, #tpu.memory_space<vmem>>, vector<1x1x128xf32>
    %79 = vector.shape_cast %78 : vector<1x1x128xf32> to vector<1x128xf32>
    %80 = vector.broadcast %76 : f32 to vector<1x128xf32>
    %81 = arith.mulf %80, %1 : vector<1x128xf32>
    %82 = arith.addf %79, %81 : vector<1x128xf32>
    %c1_i32_33 = arith.constant 1 : i32
    %83 = vector.broadcast %c1_i32_33 : i32 to vector<8x128xi32>
    %84 = arith.cmpi eq, %3, %83 : vector<8x128xi32>
    %85 = vector.shape_cast %82 : vector<1x128xf32> to vector<1x128xf32>
    %86 = vector.broadcast %85 : vector<1x128xf32> to vector<8x128xf32>
    %87 = arith.select %84, %86, %74 : vector<8x128xi1>, vector<8x128xf32>
    %88 = arith.truncf %60 : vector<8x32xf32> to vector<8x32xbf16>
    %cst_34 = arith.constant dense<0.000000e+00> : vector<8x128xf32>
    %89 = tpu.matmul %88, %0, %cst_34 {dimension_numbers = #tpu.dot_dimension_numbers<[1], [0], [0], [1], [0, 0, 1, 1], [], []>} : vector<8x32xbf16>, vector<32x128xbf16>, vector<8x128xf32> -> vector<8x128xf32>
    %90 = arith.addf %87, %89 : vector<8x128xf32>
    %91 = arith.addf %90, %90 : vector<8x128xf32>
    %92 = arith.select %8, %91, %90 : vector<8x128xi1>, vector<8x128xf32>
    %93 = arith.negf %92 : vector<8x128xf32>
    %94 = math.exp %93 : vector<8x128xf32>
    %cst_35 = arith.constant 1.000000e+00 : f32
    %95 = vector.broadcast %cst_35 : f32 to vector<8x128xf32>
    %96 = arith.addf %95, %94 : vector<8x128xf32>
    %97 = arith.divf %95, %96 : vector<8x128xf32>
    %98 = arith.addf %97, %97 : vector<8x128xf32>
    %cst_36 = arith.constant 1.000000e+00 : f32
    %99 = vector.broadcast %cst_36 : f32 to vector<8x128xf32>
    %100 = arith.subf %98, %99 : vector<8x128xf32>
    %101 = arith.select %8, %100, %97 : vector<8x128xi1>, vector<8x128xf32>
    %102 = vector.extract_strided_slice %101 {offsets = [0, 0], sizes = [8, 32], strides = [1, 1]} : vector<8x128xf32> to vector<8x32xf32>
    %103 = vector.extract_strided_slice %101 {offsets = [0, 32], sizes = [8, 32], strides = [1, 1]} : vector<8x128xf32> to vector<8x32xf32>
    %104 = vector.extract_strided_slice %101 {offsets = [0, 64], sizes = [8, 32], strides = [1, 1]} : vector<8x128xf32> to vector<8x32xf32>
    %105 = vector.extract_strided_slice %101 {offsets = [0, 96], sizes = [8, 32], strides = [1, 1]} : vector<8x128xf32> to vector<8x32xf32>
    %106 = arith.mulf %103, %58 : vector<8x32xf32>
    %107 = arith.mulf %102, %104 : vector<8x32xf32>
    %108 = arith.addf %106, %107 : vector<8x32xf32>
    %109 = math.tanh %108 : vector<8x32xf32>
    %110 = arith.mulf %105, %109 : vector<8x32xf32>
    %cst_37 = arith.constant 0.000000e+00 : f32
    %111 = vector.broadcast %cst_37 : f32 to vector<8x128xf32>
    %c0_38 = arith.constant 0 : index
    %c2 = arith.constant 2 : index
    %112 = memref.load %arg0[%c0_38, %c2] : memref<2x8xi32, #tpu.memory_space<smem>>
    %c0_39 = arith.constant 0 : index
    %c2_40 = arith.constant 2 : index
    %113 = memref.load %arg1[%c0_39, %c2_40] : memref<2x8xf32, #tpu.memory_space<smem>>
    %114 = arith.index_cast %112 : i32 to index
    %c0_41 = arith.constant 0 : index
    %c0_42 = arith.constant 0 : index
    %115 = vector.load %arg2[%114, %c0_41, %c0_42] : memref<10x1x128xf32, #tpu.memory_space<vmem>>, vector<1x1x128xf32>
    %116 = vector.shape_cast %115 : vector<1x1x128xf32> to vector<1x128xf32>
    %117 = vector.broadcast %113 : f32 to vector<1x128xf32>
    %118 = arith.mulf %117, %1 : vector<1x128xf32>
    %119 = arith.addf %116, %118 : vector<1x128xf32>
    %c0_i32_43 = arith.constant 0 : i32
    %120 = vector.broadcast %c0_i32_43 : i32 to vector<8x128xi32>
    %121 = arith.cmpi eq, %3, %120 : vector<8x128xi32>
    %122 = vector.shape_cast %119 : vector<1x128xf32> to vector<1x128xf32>
    %123 = vector.broadcast %122 : vector<1x128xf32> to vector<8x128xf32>
    %124 = arith.select %121, %123, %111 : vector<8x128xi1>, vector<8x128xf32>
    %c1_44 = arith.constant 1 : index
    %c2_45 = arith.constant 2 : index
    %125 = memref.load %arg0[%c1_44, %c2_45] : memref<2x8xi32, #tpu.memory_space<smem>>
    %c1_46 = arith.constant 1 : index
    %c2_47 = arith.constant 2 : index
    %126 = memref.load %arg1[%c1_46, %c2_47] : memref<2x8xf32, #tpu.memory_space<smem>>
    %127 = arith.index_cast %125 : i32 to index
    %c0_48 = arith.constant 0 : index
    %c0_49 = arith.constant 0 : index
    %128 = vector.load %arg2[%127, %c0_48, %c0_49] : memref<10x1x128xf32, #tpu.memory_space<vmem>>, vector<1x1x128xf32>
    %129 = vector.shape_cast %128 : vector<1x1x128xf32> to vector<1x128xf32>
    %130 = vector.broadcast %126 : f32 to vector<1x128xf32>
    %131 = arith.mulf %130, %1 : vector<1x128xf32>
    %132 = arith.addf %129, %131 : vector<1x128xf32>
    %c1_i32_50 = arith.constant 1 : i32
    %133 = vector.broadcast %c1_i32_50 : i32 to vector<8x128xi32>
    %134 = arith.cmpi eq, %3, %133 : vector<8x128xi32>
    %135 = vector.shape_cast %132 : vector<1x128xf32> to vector<1x128xf32>
    %136 = vector.broadcast %135 : vector<1x128xf32> to vector<8x128xf32>
    %137 = arith.select %134, %136, %124 : vector<8x128xi1>, vector<8x128xf32>
    %138 = arith.truncf %110 : vector<8x32xf32> to vector<8x32xbf16>
    %cst_51 = arith.constant dense<0.000000e+00> : vector<8x128xf32>
    %139 = tpu.matmul %138, %0, %cst_51 {dimension_numbers = #tpu.dot_dimension_numbers<[1], [0], [0], [1], [0, 0, 1, 1], [], []>} : vector<8x32xbf16>, vector<32x128xbf16>, vector<8x128xf32> -> vector<8x128xf32>
    %140 = arith.addf %137, %139 : vector<8x128xf32>
    %141 = arith.addf %140, %140 : vector<8x128xf32>
    %142 = arith.select %8, %141, %140 : vector<8x128xi1>, vector<8x128xf32>
    %143 = arith.negf %142 : vector<8x128xf32>
    %144 = math.exp %143 : vector<8x128xf32>
    %cst_52 = arith.constant 1.000000e+00 : f32
    %145 = vector.broadcast %cst_52 : f32 to vector<8x128xf32>
    %146 = arith.addf %145, %144 : vector<8x128xf32>
    %147 = arith.divf %145, %146 : vector<8x128xf32>
    %148 = arith.addf %147, %147 : vector<8x128xf32>
    %cst_53 = arith.constant 1.000000e+00 : f32
    %149 = vector.broadcast %cst_53 : f32 to vector<8x128xf32>
    %150 = arith.subf %148, %149 : vector<8x128xf32>
    %151 = arith.select %8, %150, %147 : vector<8x128xi1>, vector<8x128xf32>
    %152 = vector.extract_strided_slice %151 {offsets = [0, 0], sizes = [8, 32], strides = [1, 1]} : vector<8x128xf32> to vector<8x32xf32>
    %153 = vector.extract_strided_slice %151 {offsets = [0, 32], sizes = [8, 32], strides = [1, 1]} : vector<8x128xf32> to vector<8x32xf32>
    %154 = vector.extract_strided_slice %151 {offsets = [0, 64], sizes = [8, 32], strides = [1, 1]} : vector<8x128xf32> to vector<8x32xf32>
    %155 = vector.extract_strided_slice %151 {offsets = [0, 96], sizes = [8, 32], strides = [1, 1]} : vector<8x128xf32> to vector<8x32xf32>
    %156 = arith.mulf %153, %108 : vector<8x32xf32>
    %157 = arith.mulf %152, %154 : vector<8x32xf32>
    %158 = arith.addf %156, %157 : vector<8x32xf32>
    %159 = math.tanh %158 : vector<8x32xf32>
    %160 = arith.mulf %155, %159 : vector<8x32xf32>
    %cst_54 = arith.constant 0.000000e+00 : f32
    %161 = vector.broadcast %cst_54 : f32 to vector<8x128xf32>
    %c0_55 = arith.constant 0 : index
    %c3 = arith.constant 3 : index
    %162 = memref.load %arg0[%c0_55, %c3] : memref<2x8xi32, #tpu.memory_space<smem>>
    %c0_56 = arith.constant 0 : index
    %c3_57 = arith.constant 3 : index
    %163 = memref.load %arg1[%c0_56, %c3_57] : memref<2x8xf32, #tpu.memory_space<smem>>
    %164 = arith.index_cast %162 : i32 to index
    %c0_58 = arith.constant 0 : index
    %c0_59 = arith.constant 0 : index
    %165 = vector.load %arg2[%164, %c0_58, %c0_59] : memref<10x1x128xf32, #tpu.memory_space<vmem>>, vector<1x1x128xf32>
    %166 = vector.shape_cast %165 : vector<1x1x128xf32> to vector<1x128xf32>
    %167 = vector.broadcast %163 : f32 to vector<1x128xf32>
    %168 = arith.mulf %167, %1 : vector<1x128xf32>
    %169 = arith.addf %166, %168 : vector<1x128xf32>
    %c0_i32_60 = arith.constant 0 : i32
    %170 = vector.broadcast %c0_i32_60 : i32 to vector<8x128xi32>
    %171 = arith.cmpi eq, %3, %170 : vector<8x128xi32>
    %172 = vector.shape_cast %169 : vector<1x128xf32> to vector<1x128xf32>
    %173 = vector.broadcast %172 : vector<1x128xf32> to vector<8x128xf32>
    %174 = arith.select %171, %173, %161 : vector<8x128xi1>, vector<8x128xf32>
    %c1_61 = arith.constant 1 : index
    %c3_62 = arith.constant 3 : index
    %175 = memref.load %arg0[%c1_61, %c3_62] : memref<2x8xi32, #tpu.memory_space<smem>>
    %c1_63 = arith.constant 1 : index
    %c3_64 = arith.constant 3 : index
    %176 = memref.load %arg1[%c1_63, %c3_64] : memref<2x8xf32, #tpu.memory_space<smem>>
    %177 = arith.index_cast %175 : i32 to index
    %c0_65 = arith.constant 0 : index
    %c0_66 = arith.constant 0 : index
    %178 = vector.load %arg2[%177, %c0_65, %c0_66] : memref<10x1x128xf32, #tpu.memory_space<vmem>>, vector<1x1x128xf32>
    %179 = vector.shape_cast %178 : vector<1x1x128xf32> to vector<1x128xf32>
    %180 = vector.broadcast %176 : f32 to vector<1x128xf32>
    %181 = arith.mulf %180, %1 : vector<1x128xf32>
    %182 = arith.addf %179, %181 : vector<1x128xf32>
    %c1_i32_67 = arith.constant 1 : i32
    %183 = vector.broadcast %c1_i32_67 : i32 to vector<8x128xi32>
    %184 = arith.cmpi eq, %3, %183 : vector<8x128xi32>
    %185 = vector.shape_cast %182 : vector<1x128xf32> to vector<1x128xf32>
    %186 = vector.broadcast %185 : vector<1x128xf32> to vector<8x128xf32>
    %187 = arith.select %184, %186, %174 : vector<8x128xi1>, vector<8x128xf32>
    %188 = arith.truncf %160 : vector<8x32xf32> to vector<8x32xbf16>
    %cst_68 = arith.constant dense<0.000000e+00> : vector<8x128xf32>
    %189 = tpu.matmul %188, %0, %cst_68 {dimension_numbers = #tpu.dot_dimension_numbers<[1], [0], [0], [1], [0, 0, 1, 1], [], []>} : vector<8x32xbf16>, vector<32x128xbf16>, vector<8x128xf32> -> vector<8x128xf32>
    %190 = arith.addf %187, %189 : vector<8x128xf32>
    %191 = arith.addf %190, %190 : vector<8x128xf32>
    %192 = arith.select %8, %191, %190 : vector<8x128xi1>, vector<8x128xf32>
    %193 = arith.negf %192 : vector<8x128xf32>
    %194 = math.exp %193 : vector<8x128xf32>
    %cst_69 = arith.constant 1.000000e+00 : f32
    %195 = vector.broadcast %cst_69 : f32 to vector<8x128xf32>
    %196 = arith.addf %195, %194 : vector<8x128xf32>
    %197 = arith.divf %195, %196 : vector<8x128xf32>
    %198 = arith.addf %197, %197 : vector<8x128xf32>
    %cst_70 = arith.constant 1.000000e+00 : f32
    %199 = vector.broadcast %cst_70 : f32 to vector<8x128xf32>
    %200 = arith.subf %198, %199 : vector<8x128xf32>
    %201 = arith.select %8, %200, %197 : vector<8x128xi1>, vector<8x128xf32>
    %202 = vector.extract_strided_slice %201 {offsets = [0, 0], sizes = [8, 32], strides = [1, 1]} : vector<8x128xf32> to vector<8x32xf32>
    %203 = vector.extract_strided_slice %201 {offsets = [0, 32], sizes = [8, 32], strides = [1, 1]} : vector<8x128xf32> to vector<8x32xf32>
    %204 = vector.extract_strided_slice %201 {offsets = [0, 64], sizes = [8, 32], strides = [1, 1]} : vector<8x128xf32> to vector<8x32xf32>
    %205 = vector.extract_strided_slice %201 {offsets = [0, 96], sizes = [8, 32], strides = [1, 1]} : vector<8x128xf32> to vector<8x32xf32>
    %206 = arith.mulf %203, %158 : vector<8x32xf32>
    %207 = arith.mulf %202, %204 : vector<8x32xf32>
    %208 = arith.addf %206, %207 : vector<8x32xf32>
    %209 = math.tanh %208 : vector<8x32xf32>
    %210 = arith.mulf %205, %209 : vector<8x32xf32>
    %cst_71 = arith.constant 0.000000e+00 : f32
    %211 = vector.broadcast %cst_71 : f32 to vector<8x128xf32>
    %c0_72 = arith.constant 0 : index
    %c4 = arith.constant 4 : index
    %212 = memref.load %arg0[%c0_72, %c4] : memref<2x8xi32, #tpu.memory_space<smem>>
    %c0_73 = arith.constant 0 : index
    %c4_74 = arith.constant 4 : index
    %213 = memref.load %arg1[%c0_73, %c4_74] : memref<2x8xf32, #tpu.memory_space<smem>>
    %214 = arith.index_cast %212 : i32 to index
    %c0_75 = arith.constant 0 : index
    %c0_76 = arith.constant 0 : index
    %215 = vector.load %arg2[%214, %c0_75, %c0_76] : memref<10x1x128xf32, #tpu.memory_space<vmem>>, vector<1x1x128xf32>
    %216 = vector.shape_cast %215 : vector<1x1x128xf32> to vector<1x128xf32>
    %217 = vector.broadcast %213 : f32 to vector<1x128xf32>
    %218 = arith.mulf %217, %1 : vector<1x128xf32>
    %219 = arith.addf %216, %218 : vector<1x128xf32>
    %c0_i32_77 = arith.constant 0 : i32
    %220 = vector.broadcast %c0_i32_77 : i32 to vector<8x128xi32>
    %221 = arith.cmpi eq, %3, %220 : vector<8x128xi32>
    %222 = vector.shape_cast %219 : vector<1x128xf32> to vector<1x128xf32>
    %223 = vector.broadcast %222 : vector<1x128xf32> to vector<8x128xf32>
    %224 = arith.select %221, %223, %211 : vector<8x128xi1>, vector<8x128xf32>
    %c1_78 = arith.constant 1 : index
    %c4_79 = arith.constant 4 : index
    %225 = memref.load %arg0[%c1_78, %c4_79] : memref<2x8xi32, #tpu.memory_space<smem>>
    %c1_80 = arith.constant 1 : index
    %c4_81 = arith.constant 4 : index
    %226 = memref.load %arg1[%c1_80, %c4_81] : memref<2x8xf32, #tpu.memory_space<smem>>
    %227 = arith.index_cast %225 : i32 to index
    %c0_82 = arith.constant 0 : index
    %c0_83 = arith.constant 0 : index
    %228 = vector.load %arg2[%227, %c0_82, %c0_83] : memref<10x1x128xf32, #tpu.memory_space<vmem>>, vector<1x1x128xf32>
    %229 = vector.shape_cast %228 : vector<1x1x128xf32> to vector<1x128xf32>
    %230 = vector.broadcast %226 : f32 to vector<1x128xf32>
    %231 = arith.mulf %230, %1 : vector<1x128xf32>
    %232 = arith.addf %229, %231 : vector<1x128xf32>
    %c1_i32_84 = arith.constant 1 : i32
    %233 = vector.broadcast %c1_i32_84 : i32 to vector<8x128xi32>
    %234 = arith.cmpi eq, %3, %233 : vector<8x128xi32>
    %235 = vector.shape_cast %232 : vector<1x128xf32> to vector<1x128xf32>
    %236 = vector.broadcast %235 : vector<1x128xf32> to vector<8x128xf32>
    %237 = arith.select %234, %236, %224 : vector<8x128xi1>, vector<8x128xf32>
    %238 = arith.truncf %210 : vector<8x32xf32> to vector<8x32xbf16>
    %cst_85 = arith.constant dense<0.000000e+00> : vector<8x128xf32>
    %239 = tpu.matmul %238, %0, %cst_85 {dimension_numbers = #tpu.dot_dimension_numbers<[1], [0], [0], [1], [0, 0, 1, 1], [], []>} : vector<8x32xbf16>, vector<32x128xbf16>, vector<8x128xf32> -> vector<8x128xf32>
    %240 = arith.addf %237, %239 : vector<8x128xf32>
    %241 = arith.addf %240, %240 : vector<8x128xf32>
    %242 = arith.select %8, %241, %240 : vector<8x128xi1>, vector<8x128xf32>
    %243 = arith.negf %242 : vector<8x128xf32>
    %244 = math.exp %243 : vector<8x128xf32>
    %cst_86 = arith.constant 1.000000e+00 : f32
    %245 = vector.broadcast %cst_86 : f32 to vector<8x128xf32>
    %246 = arith.addf %245, %244 : vector<8x128xf32>
    %247 = arith.divf %245, %246 : vector<8x128xf32>
    %248 = arith.addf %247, %247 : vector<8x128xf32>
    %cst_87 = arith.constant 1.000000e+00 : f32
    %249 = vector.broadcast %cst_87 : f32 to vector<8x128xf32>
    %250 = arith.subf %248, %249 : vector<8x128xf32>
    %251 = arith.select %8, %250, %247 : vector<8x128xi1>, vector<8x128xf32>
    %252 = vector.extract_strided_slice %251 {offsets = [0, 0], sizes = [8, 32], strides = [1, 1]} : vector<8x128xf32> to vector<8x32xf32>
    %253 = vector.extract_strided_slice %251 {offsets = [0, 32], sizes = [8, 32], strides = [1, 1]} : vector<8x128xf32> to vector<8x32xf32>
    %254 = vector.extract_strided_slice %251 {offsets = [0, 64], sizes = [8, 32], strides = [1, 1]} : vector<8x128xf32> to vector<8x32xf32>
    %255 = vector.extract_strided_slice %251 {offsets = [0, 96], sizes = [8, 32], strides = [1, 1]} : vector<8x128xf32> to vector<8x32xf32>
    %256 = arith.mulf %253, %208 : vector<8x32xf32>
    %257 = arith.mulf %252, %254 : vector<8x32xf32>
    %258 = arith.addf %256, %257 : vector<8x32xf32>
    %259 = math.tanh %258 : vector<8x32xf32>
    %260 = arith.mulf %255, %259 : vector<8x32xf32>
    %cst_88 = arith.constant 0.000000e+00 : f32
    %261 = vector.broadcast %cst_88 : f32 to vector<8x128xf32>
    %c0_89 = arith.constant 0 : index
    %c5 = arith.constant 5 : index
    %262 = memref.load %arg0[%c0_89, %c5] : memref<2x8xi32, #tpu.memory_space<smem>>
    %c0_90 = arith.constant 0 : index
    %c5_91 = arith.constant 5 : index
    %263 = memref.load %arg1[%c0_90, %c5_91] : memref<2x8xf32, #tpu.memory_space<smem>>
    %264 = arith.index_cast %262 : i32 to index
    %c0_92 = arith.constant 0 : index
    %c0_93 = arith.constant 0 : index
    %265 = vector.load %arg2[%264, %c0_92, %c0_93] : memref<10x1x128xf32, #tpu.memory_space<vmem>>, vector<1x1x128xf32>
    %266 = vector.shape_cast %265 : vector<1x1x128xf32> to vector<1x128xf32>
    %267 = vector.broadcast %263 : f32 to vector<1x128xf32>
    %268 = arith.mulf %267, %1 : vector<1x128xf32>
    %269 = arith.addf %266, %268 : vector<1x128xf32>
    %c0_i32_94 = arith.constant 0 : i32
    %270 = vector.broadcast %c0_i32_94 : i32 to vector<8x128xi32>
    %271 = arith.cmpi eq, %3, %270 : vector<8x128xi32>
    %272 = vector.shape_cast %269 : vector<1x128xf32> to vector<1x128xf32>
    %273 = vector.broadcast %272 : vector<1x128xf32> to vector<8x128xf32>
    %274 = arith.select %271, %273, %261 : vector<8x128xi1>, vector<8x128xf32>
    %c1_95 = arith.constant 1 : index
    %c5_96 = arith.constant 5 : index
    %275 = memref.load %arg0[%c1_95, %c5_96] : memref<2x8xi32, #tpu.memory_space<smem>>
    %c1_97 = arith.constant 1 : index
    %c5_98 = arith.constant 5 : index
    %276 = memref.load %arg1[%c1_97, %c5_98] : memref<2x8xf32, #tpu.memory_space<smem>>
    %277 = arith.index_cast %275 : i32 to index
    %c0_99 = arith.constant 0 : index
    %c0_100 = arith.constant 0 : index
    %278 = vector.load %arg2[%277, %c0_99, %c0_100] : memref<10x1x128xf32, #tpu.memory_space<vmem>>, vector<1x1x128xf32>
    %279 = vector.shape_cast %278 : vector<1x1x128xf32> to vector<1x128xf32>
    %280 = vector.broadcast %276 : f32 to vector<1x128xf32>
    %281 = arith.mulf %280, %1 : vector<1x128xf32>
    %282 = arith.addf %279, %281 : vector<1x128xf32>
    %c1_i32_101 = arith.constant 1 : i32
    %283 = vector.broadcast %c1_i32_101 : i32 to vector<8x128xi32>
    %284 = arith.cmpi eq, %3, %283 : vector<8x128xi32>
    %285 = vector.shape_cast %282 : vector<1x128xf32> to vector<1x128xf32>
    %286 = vector.broadcast %285 : vector<1x128xf32> to vector<8x128xf32>
    %287 = arith.select %284, %286, %274 : vector<8x128xi1>, vector<8x128xf32>
    %288 = arith.truncf %260 : vector<8x32xf32> to vector<8x32xbf16>
    %cst_102 = arith.constant dense<0.000000e+00> : vector<8x128xf32>
    %289 = tpu.matmul %288, %0, %cst_102 {dimension_numbers = #tpu.dot_dimension_numbers<[1], [0], [0], [1], [0, 0, 1, 1], [], []>} : vector<8x32xbf16>, vector<32x128xbf16>, vector<8x128xf32> -> vector<8x128xf32>
    %290 = arith.addf %287, %289 : vector<8x128xf32>
    %291 = arith.addf %290, %290 : vector<8x128xf32>
    %292 = arith.select %8, %291, %290 : vector<8x128xi1>, vector<8x128xf32>
    %293 = arith.negf %292 : vector<8x128xf32>
    %294 = math.exp %293 : vector<8x128xf32>
    %cst_103 = arith.constant 1.000000e+00 : f32
    %295 = vector.broadcast %cst_103 : f32 to vector<8x128xf32>
    %296 = arith.addf %295, %294 : vector<8x128xf32>
    %297 = arith.divf %295, %296 : vector<8x128xf32>
    %298 = arith.addf %297, %297 : vector<8x128xf32>
    %cst_104 = arith.constant 1.000000e+00 : f32
    %299 = vector.broadcast %cst_104 : f32 to vector<8x128xf32>
    %300 = arith.subf %298, %299 : vector<8x128xf32>
    %301 = arith.select %8, %300, %297 : vector<8x128xi1>, vector<8x128xf32>
    %302 = vector.extract_strided_slice %301 {offsets = [0, 0], sizes = [8, 32], strides = [1, 1]} : vector<8x128xf32> to vector<8x32xf32>
    %303 = vector.extract_strided_slice %301 {offsets = [0, 32], sizes = [8, 32], strides = [1, 1]} : vector<8x128xf32> to vector<8x32xf32>
    %304 = vector.extract_strided_slice %301 {offsets = [0, 64], sizes = [8, 32], strides = [1, 1]} : vector<8x128xf32> to vector<8x32xf32>
    %305 = vector.extract_strided_slice %301 {offsets = [0, 96], sizes = [8, 32], strides = [1, 1]} : vector<8x128xf32> to vector<8x32xf32>
    %306 = arith.mulf %303, %258 : vector<8x32xf32>
    %307 = arith.mulf %302, %304 : vector<8x32xf32>
    %308 = arith.addf %306, %307 : vector<8x32xf32>
    %309 = math.tanh %308 : vector<8x32xf32>
    %310 = arith.mulf %305, %309 : vector<8x32xf32>
    %cst_105 = arith.constant 0.000000e+00 : f32
    %311 = vector.broadcast %cst_105 : f32 to vector<8x128xf32>
    %c0_106 = arith.constant 0 : index
    %c6 = arith.constant 6 : index
    %312 = memref.load %arg0[%c0_106, %c6] : memref<2x8xi32, #tpu.memory_space<smem>>
    %c0_107 = arith.constant 0 : index
    %c6_108 = arith.constant 6 : index
    %313 = memref.load %arg1[%c0_107, %c6_108] : memref<2x8xf32, #tpu.memory_space<smem>>
    %314 = arith.index_cast %312 : i32 to index
    %c0_109 = arith.constant 0 : index
    %c0_110 = arith.constant 0 : index
    %315 = vector.load %arg2[%314, %c0_109, %c0_110] : memref<10x1x128xf32, #tpu.memory_space<vmem>>, vector<1x1x128xf32>
    %316 = vector.shape_cast %315 : vector<1x1x128xf32> to vector<1x128xf32>
    %317 = vector.broadcast %313 : f32 to vector<1x128xf32>
    %318 = arith.mulf %317, %1 : vector<1x128xf32>
    %319 = arith.addf %316, %318 : vector<1x128xf32>
    %c0_i32_111 = arith.constant 0 : i32
    %320 = vector.broadcast %c0_i32_111 : i32 to vector<8x128xi32>
    %321 = arith.cmpi eq, %3, %320 : vector<8x128xi32>
    %322 = vector.shape_cast %319 : vector<1x128xf32> to vector<1x128xf32>
    %323 = vector.broadcast %322 : vector<1x128xf32> to vector<8x128xf32>
    %324 = arith.select %321, %323, %311 : vector<8x128xi1>, vector<8x128xf32>
    %c1_112 = arith.constant 1 : index
    %c6_113 = arith.constant 6 : index
    %325 = memref.load %arg0[%c1_112, %c6_113] : memref<2x8xi32, #tpu.memory_space<smem>>
    %c1_114 = arith.constant 1 : index
    %c6_115 = arith.constant 6 : index
    %326 = memref.load %arg1[%c1_114, %c6_115] : memref<2x8xf32, #tpu.memory_space<smem>>
    %327 = arith.index_cast %325 : i32 to index
    %c0_116 = arith.constant 0 : index
    %c0_117 = arith.constant 0 : index
    %328 = vector.load %arg2[%327, %c0_116, %c0_117] : memref<10x1x128xf32, #tpu.memory_space<vmem>>, vector<1x1x128xf32>
    %329 = vector.shape_cast %328 : vector<1x1x128xf32> to vector<1x128xf32>
    %330 = vector.broadcast %326 : f32 to vector<1x128xf32>
    %331 = arith.mulf %330, %1 : vector<1x128xf32>
    %332 = arith.addf %329, %331 : vector<1x128xf32>
    %c1_i32_118 = arith.constant 1 : i32
    %333 = vector.broadcast %c1_i32_118 : i32 to vector<8x128xi32>
    %334 = arith.cmpi eq, %3, %333 : vector<8x128xi32>
    %335 = vector.shape_cast %332 : vector<1x128xf32> to vector<1x128xf32>
    %336 = vector.broadcast %335 : vector<1x128xf32> to vector<8x128xf32>
    %337 = arith.select %334, %336, %324 : vector<8x128xi1>, vector<8x128xf32>
    %338 = arith.truncf %310 : vector<8x32xf32> to vector<8x32xbf16>
    %cst_119 = arith.constant dense<0.000000e+00> : vector<8x128xf32>
    %339 = tpu.matmul %338, %0, %cst_119 {dimension_numbers = #tpu.dot_dimension_numbers<[1], [0], [0], [1], [0, 0, 1, 1], [], []>} : vector<8x32xbf16>, vector<32x128xbf16>, vector<8x128xf32> -> vector<8x128xf32>
    %340 = arith.addf %337, %339 : vector<8x128xf32>
    %341 = arith.addf %340, %340 : vector<8x128xf32>
    %342 = arith.select %8, %341, %340 : vector<8x128xi1>, vector<8x128xf32>
    %343 = arith.negf %342 : vector<8x128xf32>
    %344 = math.exp %343 : vector<8x128xf32>
    %cst_120 = arith.constant 1.000000e+00 : f32
    %345 = vector.broadcast %cst_120 : f32 to vector<8x128xf32>
    %346 = arith.addf %345, %344 : vector<8x128xf32>
    %347 = arith.divf %345, %346 : vector<8x128xf32>
    %348 = arith.addf %347, %347 : vector<8x128xf32>
    %cst_121 = arith.constant 1.000000e+00 : f32
    %349 = vector.broadcast %cst_121 : f32 to vector<8x128xf32>
    %350 = arith.subf %348, %349 : vector<8x128xf32>
    %351 = arith.select %8, %350, %347 : vector<8x128xi1>, vector<8x128xf32>
    %352 = vector.extract_strided_slice %351 {offsets = [0, 0], sizes = [8, 32], strides = [1, 1]} : vector<8x128xf32> to vector<8x32xf32>
    %353 = vector.extract_strided_slice %351 {offsets = [0, 32], sizes = [8, 32], strides = [1, 1]} : vector<8x128xf32> to vector<8x32xf32>
    %354 = vector.extract_strided_slice %351 {offsets = [0, 64], sizes = [8, 32], strides = [1, 1]} : vector<8x128xf32> to vector<8x32xf32>
    %355 = vector.extract_strided_slice %351 {offsets = [0, 96], sizes = [8, 32], strides = [1, 1]} : vector<8x128xf32> to vector<8x32xf32>
    %356 = arith.mulf %353, %308 : vector<8x32xf32>
    %357 = arith.mulf %352, %354 : vector<8x32xf32>
    %358 = arith.addf %356, %357 : vector<8x32xf32>
    %359 = math.tanh %358 : vector<8x32xf32>
    %360 = arith.mulf %355, %359 : vector<8x32xf32>
    %c0_122 = arith.constant 0 : index
    %361 = memref.load %arg5[%c0_122] : memref<2xf32, #tpu.memory_space<smem>>
    %c1_123 = arith.constant 1 : index
    %362 = memref.load %arg5[%c1_123] : memref<2xf32, #tpu.memory_space<smem>>
    %363 = tpu.iota {dimensions = array<i32: 0>} : vector<8x1xi32>
    %cst_124 = arith.constant 1.000000e+00 : f32
    %364 = vector.broadcast %cst_124 : f32 to vector<8x1xf32>
    %c0_i32_125 = arith.constant 0 : i32
    %365 = vector.broadcast %c0_i32_125 : i32 to vector<8x1xi32>
    %366 = arith.cmpi eq, %363, %365 : vector<8x1xi32>
    %c0_126 = arith.constant 0 : index
    %c7 = arith.constant 7 : index
    %367 = memref.load %arg1[%c0_126, %c7] : memref<2x8xf32, #tpu.memory_space<smem>>
    %368 = vector.broadcast %367 : f32 to vector<8x1xf32>
    %369 = arith.select %366, %368, %364 : vector<8x1xi1>, vector<8x1xf32>
    %c1_i32_127 = arith.constant 1 : i32
    %370 = vector.broadcast %c1_i32_127 : i32 to vector<8x1xi32>
    %371 = arith.cmpi eq, %363, %370 : vector<8x1xi32>
    %c1_128 = arith.constant 1 : index
    %c7_129 = arith.constant 7 : index
    %372 = memref.load %arg1[%c1_128, %c7_129] : memref<2x8xf32, #tpu.memory_space<smem>>
    %373 = vector.broadcast %372 : f32 to vector<8x1xf32>
    %374 = arith.select %371, %373, %369 : vector<8x1xi1>, vector<8x1xf32>
    %375 = vector.broadcast %361 : f32 to vector<8x1xf32>
    %376 = arith.mulf %374, %375 : vector<8x1xf32>
    %377 = vector.broadcast %362 : f32 to vector<8x1xf32>
    %378 = arith.addf %376, %377 : vector<8x1xf32>
    %c0_130 = arith.constant 0 : index
    %c0_131 = arith.constant 0 : index
    %379 = vector.load %arg7[%c0_130, %c0_131] : memref<1x32xf32, #tpu.memory_space<vmem>>, vector<1x32xf32>
    %380 = arith.truncf %360 : vector<8x32xf32> to vector<8x32xbf16>
    %c0_132 = arith.constant 0 : index
    %c0_133 = arith.constant 0 : index
    %381 = vector.load %arg6[%c0_132, %c0_133] : memref<32x32xbf16, #tpu.memory_space<vmem>>, vector<32x32xbf16>
    %cst_134 = arith.constant dense<0.000000e+00> : vector<8x32xf32>
    %382 = tpu.matmul %380, %381, %cst_134 {dimension_numbers = #tpu.dot_dimension_numbers<[1], [0], [0], [1], [0, 0, 1, 1], [], []>} : vector<8x32xbf16>, vector<32x32xbf16>, vector<8x32xf32> -> vector<8x32xf32>
    %383 = vector.broadcast %378 : vector<8x1xf32> to vector<8x32xf32>
    %384 = vector.broadcast %379 : vector<1x32xf32> to vector<8x32xf32>
    %385 = arith.mulf %383, %384 : vector<8x32xf32>
    %386 = arith.addf %382, %385 : vector<8x32xf32>
    %c0_135 = arith.constant 0 : index
    %c0_136 = arith.constant 0 : index
    %387 = vector.load %arg8[%c0_135, %c0_136] : memref<1x32xf32, #tpu.memory_space<vmem>>, vector<1x32xf32>
    %388 = vector.broadcast %387 : vector<1x32xf32> to vector<8x32xf32>
    %389 = arith.addf %386, %388 : vector<8x32xf32>
    %390 = math.tanh %389 : vector<8x32xf32>
    %391 = arith.mulf %390, %390 : vector<8x32xf32>
    %cst_137 = arith.constant 1.000000e+00 : f32
    %392 = vector.broadcast %cst_137 : f32 to vector<8x32xf32>
    %393 = arith.subf %392, %391 : vector<8x32xf32>
    %394 = vector.broadcast %361 : f32 to vector<1x32xf32>
    %395 = arith.mulf %394, %379 : vector<1x32xf32>
    %396 = vector.broadcast %395 : vector<1x32xf32> to vector<8x32xf32>
    %397 = arith.mulf %393, %396 : vector<8x32xf32>
    %398 = tpu.concatenate %390, %397 in 0 : vector<8x32xf32>, vector<8x32xf32> -> vector<16x32xf32>
    %399 = arith.truncf %398 : vector<16x32xf32> to vector<16x32xbf16>
    %c0_138 = arith.constant 0 : index
    %c0_139 = arith.constant 0 : index
    %400 = vector.load %arg9[%c0_138, %c0_139] : memref<32x32xbf16, #tpu.memory_space<vmem>>, vector<32x32xbf16>
    %cst_140 = arith.constant dense<0.000000e+00> : vector<16x32xf32>
    %401 = tpu.matmul %399, %400, %cst_140 {dimension_numbers = #tpu.dot_dimension_numbers<[1], [0], [0], [1], [0, 0, 1, 1], [], []>} : vector<16x32xbf16>, vector<32x32xbf16>, vector<16x32xf32> -> vector<16x32xf32>
    %402 = vector.extract_strided_slice %401 {offsets = [0, 0], sizes = [8, 32], strides = [1, 1]} : vector<16x32xf32> to vector<8x32xf32>
    %c0_141 = arith.constant 0 : index
    %c0_142 = arith.constant 0 : index
    %403 = vector.load %arg10[%c0_141, %c0_142] : memref<1x32xf32, #tpu.memory_space<vmem>>, vector<1x32xf32>
    %404 = vector.broadcast %403 : vector<1x32xf32> to vector<8x32xf32>
    %405 = arith.addf %402, %404 : vector<8x32xf32>
    %406 = math.tanh %405 : vector<8x32xf32>
    %407 = arith.mulf %406, %406 : vector<8x32xf32>
    %cst_143 = arith.constant 1.000000e+00 : f32
    %408 = vector.broadcast %cst_143 : f32 to vector<8x32xf32>
    %409 = arith.subf %408, %407 : vector<8x32xf32>
    %410 = vector.extract_strided_slice %401 {offsets = [8, 0], sizes = [8, 32], strides = [1, 1]} : vector<16x32xf32> to vector<8x32xf32>
    %411 = arith.mulf %409, %410 : vector<8x32xf32>
    %412 = tpu.concatenate %406, %411 in 0 : vector<8x32xf32>, vector<8x32xf32> -> vector<16x32xf32>
    %413 = arith.truncf %412 : vector<16x32xf32> to vector<16x32xbf16>
    %c0_144 = arith.constant 0 : index
    %c0_145 = arith.constant 0 : index
    %414 = vector.load %arg11[%c0_144, %c0_145] : memref<32x1xbf16, #tpu.memory_space<vmem>>, vector<32x1xbf16>
    %cst_146 = arith.constant dense<0.000000e+00> : vector<16x1xf32>
    %415 = tpu.matmul %413, %414, %cst_146 {dimension_numbers = #tpu.dot_dimension_numbers<[1], [0], [0], [1], [0, 0, 1, 1], [], []>} : vector<16x32xbf16>, vector<32x1xbf16>, vector<16x1xf32> -> vector<16x1xf32>
    %416 = vector.extract_strided_slice %415 {offsets = [0, 0], sizes = [8, 1], strides = [1, 1]} : vector<16x1xf32> to vector<8x1xf32>
    %c0_147 = arith.constant 0 : index
    %c0_148 = arith.constant 0 : index
    %417 = vector.load %arg12[%c0_147, %c0_148] : memref<1x1xf32, #tpu.memory_space<vmem>>, vector<1x1xf32>
    %418 = vector.broadcast %417 : vector<1x1xf32> to vector<8x1xf32>
    %419 = arith.addf %416, %418 : vector<8x1xf32>
    %420 = vector.extract_strided_slice %415 {offsets = [8, 0], sizes = [8, 1], strides = [1, 1]} : vector<16x1xf32> to vector<8x1xf32>
    %cst_149 = arith.constant 0.000000e+00 : f32
    %421 = vector.broadcast %cst_149 : f32 to vector<8x1xf32>
    %422 = arith.maximumf %419, %421 : vector<8x1xf32>
    %423 = vector.broadcast %cst_149 : f32 to vector<8x1xf32>
    %424 = arith.subf %419, %423 : vector<8x1xf32>
    %425 = arith.cmpf one, %424, %424 : vector<8x1xf32>
    %426 = vector.broadcast %cst_149 : f32 to vector<8x1xf32>
    %427 = arith.addf %419, %426 : vector<8x1xf32>
    %428 = math.absf %424 : vector<8x1xf32>
    %cst_150 = arith.constant 0.000000e+00 : f32
    %429 = vector.broadcast %cst_150 : f32 to vector<8x1xf32>
    %430 = arith.subf %429, %428 : vector<8x1xf32>
    %431 = math.exp %430 : vector<8x1xf32>
    %432 = math.log1p %431 : vector<8x1xf32>
    %433 = arith.addf %422, %432 : vector<8x1xf32>
    %434 = arith.select %425, %427, %433 : vector<8x1xi1>, vector<8x1xf32>
    %435 = arith.negf %419 : vector<8x1xf32>
    %436 = math.exp %435 : vector<8x1xf32>
    %cst_151 = arith.constant 1.000000e+00 : f32
    %437 = vector.broadcast %cst_151 : f32 to vector<8x1xf32>
    %438 = arith.addf %437, %436 : vector<8x1xf32>
    %439 = arith.divf %437, %438 : vector<8x1xf32>
    %440 = arith.mulf %439, %420 : vector<8x1xf32>
    %cst_152 = arith.constant 0.000000e+00 : f32
    %441 = vector.broadcast %cst_152 : f32 to vector<8x1xf32>
    %442 = arith.maximumf %434, %441 : vector<8x1xf32>
    %443 = vector.broadcast %cst_152 : f32 to vector<8x1xf32>
    %444 = arith.subf %434, %443 : vector<8x1xf32>
    %445 = arith.cmpf one, %444, %444 : vector<8x1xf32>
    %446 = vector.broadcast %cst_152 : f32 to vector<8x1xf32>
    %447 = arith.addf %434, %446 : vector<8x1xf32>
    %448 = math.absf %444 : vector<8x1xf32>
    %cst_153 = arith.constant 0.000000e+00 : f32
    %449 = vector.broadcast %cst_153 : f32 to vector<8x1xf32>
    %450 = arith.subf %449, %448 : vector<8x1xf32>
    %451 = math.exp %450 : vector<8x1xf32>
    %452 = math.log1p %451 : vector<8x1xf32>
    %453 = arith.addf %442, %452 : vector<8x1xf32>
    %454 = arith.select %445, %447, %453 : vector<8x1xi1>, vector<8x1xf32>
    %455 = arith.negf %434 : vector<8x1xf32>
    %456 = math.exp %455 : vector<8x1xf32>
    %cst_154 = arith.constant 1.000000e+00 : f32
    %457 = vector.broadcast %cst_154 : f32 to vector<8x1xf32>
    %458 = arith.addf %457, %456 : vector<8x1xf32>
    %459 = arith.divf %457, %458 : vector<8x1xf32>
    %460 = arith.mulf %459, %440 : vector<8x1xf32>
    %c2_i32 = arith.constant 2 : i32
    %461 = vector.broadcast %c2_i32 : i32 to vector<8x1xi32>
    %462 = arith.cmpi slt, %363, %461 : vector<8x1xi32>
    %cst_155 = arith.constant 0.000000e+00 : f32
    %463 = vector.broadcast %cst_155 : f32 to vector<8x1xf32>
    %464 = arith.select %462, %454, %463 : vector<8x1xi1>, vector<8x1xf32>
    %465 = vector.shape_cast %464 : vector<8x1xf32> to vector<1x8x1xf32>
    %cst_156 = arith.constant dense<0.000000e+00> : vector<1xf32>
    %466 = vector.multi_reduction <add>, %465, %cst_156 [1, 2] : vector<1x8x1xf32> to vector<1xf32>
    %467 = vector.shape_cast %466 : vector<1xf32> to vector<1x1x1xf32>
    %468 = vector.extract %467[0, 0, 0] : f32 from vector<1x1x1xf32>
    %469 = vector.broadcast %468 : f32 to vector<1x1xf32>
    %cst_157 = arith.constant 5.000000e-01 : f32
    %470 = vector.broadcast %cst_157 : f32 to vector<1x1xf32>
    %471 = arith.mulf %469, %470 : vector<1x1xf32>
    %cst_158 = arith.constant 5.000000e-01 : f32
    %472 = vector.broadcast %cst_158 : f32 to vector<8x1xf32>
    %473 = arith.mulf %460, %472 : vector<8x1xf32>
    %cst_159 = arith.constant 1.000000e-10 : f32
    %474 = vector.broadcast %cst_159 : f32 to vector<8x1xf32>
    %475 = arith.addf %473, %474 : vector<8x1xf32>
    %476 = math.log %475 : vector<8x1xf32>
    %cst_160 = arith.constant 0.000000e+00 : f32
    %477 = vector.broadcast %cst_160 : f32 to vector<8x1xf32>
    %478 = arith.select %462, %476, %477 : vector<8x1xi1>, vector<8x1xf32>
    %479 = vector.shape_cast %478 : vector<8x1xf32> to vector<1x8x1xf32>
    %cst_161 = arith.constant dense<0.000000e+00> : vector<1xf32>
    %480 = vector.multi_reduction <add>, %479, %cst_161 [1, 2] : vector<1x8x1xf32> to vector<1xf32>
    %481 = vector.shape_cast %480 : vector<1xf32> to vector<1x1x1xf32>
    %482 = vector.extract %481[0, 0, 0] : f32 from vector<1x1x1xf32>
    %483 = vector.broadcast %482 : f32 to vector<1x1xf32>
    %cst_162 = arith.constant 5.000000e-01 : f32
    %484 = vector.broadcast %cst_162 : f32 to vector<1x1xf32>
    %485 = arith.mulf %483, %484 : vector<1x1xf32>
    %486 = arith.subf %471, %485 : vector<1x1xf32>
    %487 = tpu.iota {dimensions = array<i32: 0>} : vector<8x128xi32>
    %488 = tpu.iota {dimensions = array<i32: 1>} : vector<8x128xi32>
    %c0_i32_163 = arith.constant 0 : i32
    %489 = vector.broadcast %c0_i32_163 : i32 to vector<8x128xi32>
    %490 = arith.cmpi eq, %487, %489 : vector<8x128xi32>
    %c1_i32_164 = arith.constant 1 : i32
    %491 = vector.broadcast %c1_i32_164 : i32 to vector<8x128xi32>
    %492 = arith.cmpi eq, %487, %491 : vector<8x128xi32>
    %c2_i32_165 = arith.constant 2 : i32
    %493 = vector.broadcast %c2_i32_165 : i32 to vector<8x128xi32>
    %494 = arith.cmpi eq, %487, %493 : vector<8x128xi32>
    %cst_166 = arith.constant 0.000000e+00 : f32
    %495 = vector.shape_cast %471 : vector<1x1xf32> to vector<1x1xf32>
    %496 = vector.broadcast %495 : vector<1x1xf32> to vector<8x128xf32>
    %497 = vector.broadcast %cst_166 : f32 to vector<8x128xf32>
    %498 = arith.select %494, %496, %497 : vector<8x128xi1>, vector<8x128xf32>
    %499 = vector.shape_cast %485 : vector<1x1xf32> to vector<1x1xf32>
    %500 = vector.broadcast %499 : vector<1x1xf32> to vector<8x128xf32>
    %501 = arith.select %492, %500, %498 : vector<8x128xi1>, vector<8x128xf32>
    %502 = vector.shape_cast %486 : vector<1x1xf32> to vector<1x1xf32>
    %503 = vector.broadcast %502 : vector<1x1xf32> to vector<8x128xf32>
    %504 = arith.select %490, %503, %501 : vector<8x128xi1>, vector<8x128xf32>
    %c0_i32_167 = arith.constant 0 : i32
    %505 = vector.broadcast %c0_i32_167 : i32 to vector<8x128xi32>
    %506 = arith.cmpi eq, %488, %505 : vector<8x128xi32>
    %c1_i32_168 = arith.constant 1 : i32
    %507 = vector.broadcast %c1_i32_168 : i32 to vector<8x128xi32>
    %508 = arith.cmpi eq, %488, %507 : vector<8x128xi32>
    %cst_169 = arith.constant 0.000000e+00 : f32
    %509 = vector.broadcast %cst_169 : f32 to vector<8x128xf32>
    %510 = arith.select %508, %504, %509 : vector<8x128xi1>, vector<8x128xf32>
    %511 = vector.shape_cast %473 : vector<8x1xf32> to vector<8x1xf32>
    %512 = vector.broadcast %511 : vector<8x1xf32> to vector<8x128xf32>
    %513 = arith.select %506, %512, %510 : vector<8x128xi1>, vector<8x128xf32>
    %c0_170 = arith.constant 0 : index
    %c0_171 = arith.constant 0 : index
    %514 = vector.load %arg13[%c0_170, %c0_171] : memref<8x128xf32, #tpu.memory_space<vmem>>, vector<8x128xf32>
    tpu.vector_store %arg13[%c0_170, %c0_171], %513 {strides = array<i32>} : memref<8x128xf32, #tpu.memory_space<vmem>>, vector<8x128xf32>,
    return
  }
}

</mosaic_0001>

<llo_original>
// kernel: tpu_custom_call.1
$region0: #{tpu_custom_call.1}
  #allocation0 [shape = 'u32[]', space=smem, size = 0x4, offset = 0x4, fixed_abs, tag = 'smem constant byte address 0x4 - core index']
  #allocation1 [shape = 'u32[144,128]{1,0:T(1,128)}', space=vmem, size = 0x12000, scoped, tag = 'internal scratch']
  #allocation2 [shape = 'f32[1,1]{1,0:T(1,128)S(1)}', space=vmem, size = 0x200, scoped, tag = 'scoped memory for tpu_custom_call.1']
  %s0 = inlined_call_operand.hbm [shape: s32[2,8], index: 0, kind: input, shape index: {}]
  %s1 = inlined_call_operand.hbm [shape: f32[2,8], index: 1, kind: input, shape index: {}]
  %s2 = inlined_call_operand.hbm [shape: f32[10,1,128], index: 2, kind: input, shape index: {}]
  %s3 = inlined_call_operand.hbm [shape: f32[1,128], index: 3, kind: input, shape index: {}]
  %s4 = inlined_call_operand.vmem [shape: bf16[32,128], index: 4, kind: input, shape index: {}]
  %s5 = inlined_call_operand.vmem [shape: f32[2], index: 5, kind: input, shape index: {}]
  %s6 = inlined_call_operand.vmem [shape: bf16[32,32], index: 6, kind: input, shape index: {}]
  %s7 = inlined_call_operand.vmem [shape: f32[1,32], index: 7, kind: input, shape index: {}]
  %s8 = inlined_call_operand.vmem [shape: f32[1,32], index: 8, kind: input, shape index: {}]
  %s9 = inlined_call_operand.vmem [shape: bf16[32,32], index: 9, kind: input, shape index: {}]
  %s10 = inlined_call_operand.vmem [shape: f32[1,32], index: 10, kind: input, shape index: {}]
  %s11 = inlined_call_operand.vmem [shape: bf16[32,1], index: 11, kind: input, shape index: {}]
  %s12 = inlined_call_operand.<no memory space> [shape: f32[1,1], index: 12, kind: input, shape index: {}]
  %s13 = inlined_call_operand.hbm [shape: f32[8,128], index: 13, kind: output, shape index: {}]
  %s14 = sld [smem:[#allocation0]]
  $region82: #{tpu_custom_call.1} parent=0
    _
  %s16 = ssub.s32 1, %s14
  %s17 = scalar_select 0, %s16, %s14
  %v18 = vstv %s12
  %19 = vst [vmem:[#allocation2] sm:$0x1] %v18
  $region1: #{tpu_custom_call.1} parent=0
    #allocation3 [shape = 'u8[1024]{0}', space=smem, size = 0x400, scoped, tag = 'input window, operand 0, single buffered']
    #allocation4 [shape = 's32[1]{0}', space=sflag, size = 0x4, scoped, tag = 'scoped memory for tpu_custom_call.1']
    #allocation5 [shape = 's32[1]{0}', space=sflag, size = 0x4, scoped, tag = 'scoped memory for tpu_custom_call.1']
    #allocation6 [shape = 's32[1]{0}', space=sflag, size = 0x4, scoped, tag = 'scoped memory for tpu_custom_call.1']
    #allocation7 [shape = 's32[1]{0}', space=sflag, size = 0x4, scoped, tag = 'scoped memory for tpu_custom_call.1']
    #allocation8 [shape = 'u8[1024]{0}', space=smem, size = 0x400, scoped, tag = 'input window, operand 1, single buffered']
    #allocation9 [shape = 's32[1]{0}', space=sflag, size = 0x4, scoped, tag = 'scoped memory for tpu_custom_call.1']
    #allocation10 [shape = 'u8[5120]{0}', space=vmem, size = 0x1400, scoped, tag = 'input window, operand 2, single buffered']
    #allocation11 [shape = 'u8[512]{0}', space=vmem, size = 0x400, scoped, tag = 'input window, operand 3, single buffered']
    #allocation12 [shape = 's32[1]{0}', space=sflag, size = 0x4, scoped, tag = 'scoped memory for tpu_custom_call.1']
    #allocation13 [shape = 'u8[512]{0}', space=smem, size = 0x200, scoped, tag = 'input window, operand 5, single buffered']
    #allocation14 [shape = 'u8[4096]{0}', space=vmem, size = 0x1000, scoped, tag = 'output window, operand 0, single buffered']
    %20 = vsyncpa [#allocation6], 0
    %21 = vsyncpa [#allocation9], 0
    %22 = vsyncpa [#allocation4], 0
    %23 = vsyncpa [#allocation12], 0
    %24 = vsyncpa [#allocation7], 0
    %25 = vsyncpa [#allocation5], 0
    // Predicated region
    $region2: #{tpu_custom_call.1} parent=1 // pred_check
      _
    $region3: #{tpu_custom_call.1} parent=1 // pred_check_branch
      %27 = sbr.rel (0) target = $region5
    $region4: #{tpu_custom_call.1} parent=1 // pred_region
      %s29 = ssub.s32 32, 32
      %30 = vsyncadd [#allocation6], %s29
      %33 = dma.hbm_to_smem %s0, 32, [#allocation3], [#allocation6]
    $region5: #{tpu_custom_call.1} parent=1 // pred_fallthru
      _
    // Predicated region
    $region6: #{tpu_custom_call.1} parent=1 // pred_check
      _
    $region7: #{tpu_custom_call.1} parent=1 // pred_check_branch
      %35 = sbr.rel (0) target = $region9
    $region8: #{tpu_custom_call.1} parent=1 // pred_region
      %s37 = ssub.s32 32, 32
      %38 = vsyncadd [#allocation9], %s37
      %41 = dma.hbm_to_smem %s1, 32, [#allocation8], [#allocation9]
    $region9: #{tpu_custom_call.1} parent=1 // pred_fallthru
      _
    // Predicated region
    $region10: #{tpu_custom_call.1} parent=1 // pred_check
      _
    $region11: #{tpu_custom_call.1} parent=1 // pred_check_branch
      %43 = sbr.rel (0) target = $region13
    $region12: #{tpu_custom_call.1} parent=1 // pred_region
      %s45 = ssub.s32 160, 160
      %46 = vsyncadd [#allocation4], %s45
      %s47 = sshll.u32 [#allocation10], 4
      %s48 = int_to_ptr.vmem [resolvable:$true] %s47
      %53 = dma.hbm_to_vmem [thread:$0]  %s2, 160, %s48, [#allocation4], 16, 16, 1
    $region13: #{tpu_custom_call.1} parent=1 // pred_fallthru
      _
    // Predicated region
    $region14: #{tpu_custom_call.1} parent=1 // pred_check
      _
    $region15: #{tpu_custom_call.1} parent=1 // pred_check_branch
      %55 = sbr.rel (0) target = $region17
    $region16: #{tpu_custom_call.1} parent=1 // pred_region
      %s57 = ssub.s32 16, 16
      %58 = vsyncadd [#allocation12], %s57
      %s60 = sshll.u32 [#allocation11], 4
      %s61 = int_to_ptr.vmem [resolvable:$true] %s60
      %63 = dma.hbm_to_vmem [thread:$0]  %s3, 16, %s61, [#allocation12]
    $region17: #{tpu_custom_call.1} parent=1 // pred_fallthru
      _
    // Predicated region
    $region18: #{tpu_custom_call.1} parent=1 // pred_check
      _
    $region19: #{tpu_custom_call.1} parent=1 // pred_check_branch
      %65 = sbr.rel (0) target = $region21
    $region20: #{tpu_custom_call.1} parent=1 // pred_region
      _
    $region21: #{tpu_custom_call.1} parent=1 // pred_fallthru
      _
    // Predicated region
    $region22: #{tpu_custom_call.1} parent=1 // pred_check
      _
    $region23: #{tpu_custom_call.1} parent=1 // pred_check_branch
      %67 = sbr.rel (0) target = $region25
    $region24: #{tpu_custom_call.1} parent=1 // pred_region
      %s69 = ssub.s32 16, 16
      %70 = vsyncadd [#allocation7], %s69
      %s72 = sshll.u32 %s5, 4
      %s73 = int_to_ptr.vmem [resolvable:$true] %s72
      %75 = dma.vmem_to_smem %s73, 16, [#allocation13], [#allocation7]
    $region25: #{tpu_custom_call.1} parent=1 // pred_fallthru
      _
    // Predicated region
    $region26: #{tpu_custom_call.1} parent=1 // pred_check
      _
    $region27: #{tpu_custom_call.1} parent=1 // pred_check_branch
      %77 = sbr.rel (0) target = $region29
    $region28: #{tpu_custom_call.1} parent=1 // pred_region
      _
    $region29: #{tpu_custom_call.1} parent=1 // pred_fallthru
      _
    // Predicated region
    $region30: #{tpu_custom_call.1} parent=1 // pred_check
      _
    $region31: #{tpu_custom_call.1} parent=1 // pred_check_branch
      %79 = sbr.rel (0) target = $region33
    $region32: #{tpu_custom_call.1} parent=1 // pred_region
      _
    $region33: #{tpu_custom_call.1} parent=1 // pred_fallthru
      _
    // Predicated region
    $region34: #{tpu_custom_call.1} parent=1 // pred_check
      _
    $region35: #{tpu_custom_call.1} parent=1 // pred_check_branch
      %81 = sbr.rel (0) target = $region37
    $region36: #{tpu_custom_call.1} parent=1 // pred_region
      _
    $region37: #{tpu_custom_call.1} parent=1 // pred_fallthru
      _
    // Predicated region
    $region38: #{tpu_custom_call.1} parent=1 // pred_check
      _
    $region39: #{tpu_custom_call.1} parent=1 // pred_check_branch
      %83 = sbr.rel (0) target = $region41
    $region40: #{tpu_custom_call.1} parent=1 // pred_region
      _
    $region41: #{tpu_custom_call.1} parent=1 // pred_fallthru
      _
    // Predicated region
    $region42: #{tpu_custom_call.1} parent=1 // pred_check
      _
    $region43: #{tpu_custom_call.1} parent=1 // pred_check_branch
      %85 = sbr.rel (0) target = $region45
    $region44: #{tpu_custom_call.1} parent=1 // pred_region
      _
    $region45: #{tpu_custom_call.1} parent=1 // pred_fallthru
      _
    // Predicated region
    $region46: #{tpu_custom_call.1} parent=1 // pred_check
      _
    $region47: #{tpu_custom_call.1} parent=1 // pred_check_branch
      %87 = sbr.rel (0) target = $region49
    $region48: #{tpu_custom_call.1} parent=1 // pred_region
      _
    $region49: #{tpu_custom_call.1} parent=1 // pred_fallthru
      _
    // Predicated region
    $region50: #{tpu_custom_call.1} parent=1 // pred_check
      _
    $region51: #{tpu_custom_call.1} parent=1 // pred_check_branch
      %89 = sbr.rel (0) target = $region53
    $region52: #{tpu_custom_call.1} parent=1 // pred_region
      _
    $region53: #{tpu_custom_call.1} parent=1 // pred_fallthru
      _
    // Predicated region
    $region54: #{tpu_custom_call.1} parent=1 // pred_check
      _
    $region55: #{tpu_custom_call.1} parent=1 // pred_check_branch
      %91 = sbr.rel (0) target = $region57
    $region56: #{tpu_custom_call.1} parent=1 // pred_region
      %92 = dma.done [#allocation6], 32
    $region57: #{tpu_custom_call.1} parent=1 // pred_fallthru
      _
    // Predicated region
    $region58: #{tpu_custom_call.1} parent=1 // pred_check
      _
    $region59: #{tpu_custom_call.1} parent=1 // pred_check_branch
      %94 = sbr.rel (0) target = $region61
    $region60: #{tpu_custom_call.1} parent=1 // pred_region
      %95 = dma.done [#allocation9], 32
    $region61: #{tpu_custom_call.1} parent=1 // pred_fallthru
      _
    // Predicated region
    $region62: #{tpu_custom_call.1} parent=1 // pred_check
      _
    $region63: #{tpu_custom_call.1} parent=1 // pred_check_branch
      %97 = sbr.rel (0) target = $region65
    $region64: #{tpu_custom_call.1} parent=1 // pred_region
      %98 = dma.done [#allocation4], 160
    $region65: #{tpu_custom_call.1} parent=1 // pred_fallthru
      _
    // Predicated region
    $region66: #{tpu_custom_call.1} parent=1 // pred_check
      _
    $region67: #{tpu_custom_call.1} parent=1 // pred_check_branch
      %100 = sbr.rel (0) target = $region69
    $region68: #{tpu_custom_call.1} parent=1 // pred_region
      %101 = dma.done [#allocation12], 16
    $region69: #{tpu_custom_call.1} parent=1 // pred_fallthru
      _
    // Predicated region
    $region70: #{tpu_custom_call.1} parent=1 // pred_check
      _
    $region71: #{tpu_custom_call.1} parent=1 // pred_check_branch
      %103 = sbr.rel (0) target = $region73
    $region72: #{tpu_custom_call.1} parent=1 // pred_region
      %104 = dma.done [#allocation7], 16
    $region73: #{tpu_custom_call.1} parent=1 // pred_fallthru
      _
    %105 = sfence
    %v107 = vld [vmem:[%s4] sm:$0xf]
    %v108 = vld [vmem:[%s4 + $0x4] sm:$0xf]
    %v109 = vld [vmem:[%s4 + $0x8] sm:$0xf]
    %v110 = vld [vmem:[%s4 + $0xc] sm:$0xf]
    %v111 = vld [vmem:[#allocation11] sm:$0x1]
    %v112 = vlaneseq
    %v113 = vand.u32 %v112, 127
    %v114 = vlaneseq
    %v115 = vshrl.u32 %v114, 7
    %vm116 = vcmp.ge.s32.totalorder %v113, 64
    %vm117 = vcmp.lt.s32.totalorder %v113, 96
    %vm118 = vmand %vm116, %vm117
    %s119 = sld [smem:[#allocation3]]
    %s120 = sld [smem:[#allocation8]]
    %s121 = scalar_lea.vmem [#allocation10], %s119
    %v122 = vld [vmem:[%s121] sm:$0x1]
    %v123 = vstv %s120
    %v124 = vmul.f32 %v123, %v111
    %v125 = vadd.f32 %v122, %v124
    %vm126 = vcmp.eq.s32.totalorder %v115, 0
    %v128 = vlaneseq
    %v129 = vshrl.u32 %v128, 7
    %v130 = vsub.s32 0, %v129
    %v131 = vrot.slane %v125, %v130
    %v133 = vsel %vm126, %v131, 0.0
    %s134 = sld [smem:[#allocation3 + $0x80]]
    %s135 = sld [smem:[#allocation8 + $0x80]]
    %s136 = scalar_lea.vmem [#allocation10], %s134
    %v137 = vld [vmem:[%s136] sm:$0x1]
    %v138 = vstv %s135
    %v139 = vmul.f32 %v138, %v111
    %v140 = vadd.f32 %v137, %v139
    %vm141 = vcmp.eq.s32.totalorder %v115, 1
    %v143 = vlaneseq
    %v144 = vshrl.u32 %v143, 7
    %v145 = vsub.s32 0, %v144
    %v146 = vrot.slane %v140, %v145
    %v148 = vsel %vm141, %v146, %v133
    %v153 = vunpack.c.l.b16 %v107
    %v154 = vunpack.c.l.b16 %v108
    %v155 = vunpack.c.l.b16 %v109
    %v156 = vunpack.c.l.b16 %v110
    %v157 = vpack.c.b16 %v154, %v153
    %v158 = vpack.c.b16 %v156, %v155
    %vm161 = vcmask 261120
    %v163 = vsel %vm161, 0, 0
    %165 = vmatprep.subr.bf16.mxu0 0
    %166 = vmatpush1.bf16.msra.mxu0 %v157
    %167 = vmatprep.subr.bf16.mxu0 0
    %168 = vmatpush1.bf16.msra.mxu0 %v158
    %169 = vmatprep.subr.bf16.mxu0 0
    %170 = vmatpush1.bf16.msra.mxu0 0
    %171 = vmatprep.subr.bf16.mxu0 0
    %172 = vmatpush1.bf16.msra.mxu0 0
    %173 = vmatprep.subr.bf16.mxu0 0
    %174 = vmatpush1.bf16.msra.mxu0 0
    %175 = vmatprep.subr.bf16.mxu0 0
    %176 = vmatpush1.bf16.msra.mxu0 0
    %177 = vmatprep.subr.bf16.mxu0 0
    %178 = vmatpush1.bf16.msra.mxu0 0
    %179 = vmatprep.subr.bf16.mxu0 0
    %180 = vmatpush1.bf16.msra.mxu0 0
    %181 = vmatprep.subr.bf16.mxu0 0
    %182 = vmatpush1.bf16.msra.mxu0 0
    %183 = vmatprep.subr.bf16.mxu0 0
    %184 = vmatpush1.bf16.msra.mxu0 0
    %185 = vmatprep.subr.bf16.mxu0 0
    %186 = vmatpush1.bf16.msra.mxu0 0
    %187 = vmatprep.subr.bf16.mxu0 0
    %188 = vmatpush1.bf16.msra.mxu0 0
    %189 = vmatprep.subr.bf16.mxu0 0
    %190 = vmatpush1.bf16.msra.mxu0 0
    %191 = vmatprep.subr.bf16.mxu0 0
    %192 = vmatpush1.bf16.msra.mxu0 0
    %193 = vmatprep.subr.bf16.mxu0 0
    %194 = vmatpush1.bf16.msra.mxu0 0
    %195 = vmatprep.subr.bf16.mxu0 0
    %196 = vmatpush1.bf16.msra.mxu0 0
    %197 = vmatprep.mubr.bf16.mxu0 0
    %198 = vmatmul.mubr.bf16.gmra.mrb[0].mxu0 %v163
    %v199 = vpop.f32.mrb[0].mxu0
    %v200 = vadd.f32 0.0, %v199
    %v201 = vpop.f32.mrb[0].mxu0
    %v202 = vpop.f32.mrb[0].mxu0
    %v203 = vpop.f32.mrb[0].mxu0
    %204 = vdwg.mxu0
    %v205 = vadd.f32 %v148, %v200
    %v206 = vadd.f32 %v205, %v205
    %v207 = vsel %vm118, %v206, %v205
    %v208 = vxor.u32 %v207, 2147483648
    %v209 = vmul.f32 %v208, 1.442695
    %v210 = vpow.pop %v209
    %v211 = vadd.f32 %v210, 1.0
    %v212 = vrcp.pop %v211
    %v213 = vmul.f32 1.0, %v212
    %v214 = vadd.f32 %v213, %v213
    %v215 = vsub.f32 %v214, 1.0
    %v216 = vsel %vm118, %v215, %v213
    %v217 = vmul.f32 %v216, 0.0
    %219 = vrot.lane.b32.xlu0 %v216, 64
    %v220 = vpop.permute.xlu0 %219
    %v222 = vmul.f32 %v216, %v220
    %224 = vrot.lane.b32.xlu0 %v222, 32
    %v225 = vpop.permute.xlu0 %224
    %v227 = vadd.f32 %v217, %v225
    %v228 = vtanh.pop %v227
    %230 = vrot.lane.b32.xlu0 %v228, 64
    %v231 = vpop.permute.xlu0 %230
    %v233 = vmul.f32 %v216, %v231
    %s234 = sld [smem:[#allocation3 + $0x1]]
    %s235 = sld [smem:[#allocation8 + $0x1]]
    %s236 = scalar_lea.vmem [#allocation10], %s234
    %v237 = vld [vmem:[%s236] sm:$0x1]
    %v238 = vstv %s235
    %v239 = vmul.f32 %v238, %v111
    %v240 = vadd.f32 %v237, %v239
    %v242 = vlaneseq
    %v243 = vshrl.u32 %v242, 7
    %v244 = vsub.s32 0, %v243
    %v245 = vrot.slane %v240, %v244
    %v247 = vsel %vm126, %v245, 0.0
    %s248 = sld [smem:[#allocation3 + $0x81]]
    %s249 = sld [smem:[#allocation8 + $0x81]]
    %s250 = scalar_lea.vmem [#allocation10], %s248
    %v251 = vld [vmem:[%s250] sm:$0x1]
    %v252 = vstv %s249
    %v253 = vmul.f32 %v252, %v111
    %v254 = vadd.f32 %v251, %v253
    %v256 = vlaneseq
    %v257 = vshrl.u32 %v256, 7
    %v258 = vsub.s32 0, %v257
    %v259 = vrot.slane %v254, %v258
    %v261 = vsel %vm141, %v259, %v247
    %v262 = vpack.c.bf16 %v233, %v233
    %264 = vrot.lane.b32.xlu0 %v262, 32
    %v265 = vpop.permute.xlu0 %264
    %v267 = vsel %vm161, %v265, 0
    %269 = vmatprep.subr.bf16.mxu0 0
    %270 = vmatpush1.bf16.msra.mxu0 %v157
    %271 = vmatprep.subr.bf16.mxu0 0
    %272 = vmatpush1.bf16.msra.mxu0 %v158
    %273 = vmatprep.subr.bf16.mxu0 0
    %274 = vmatpush1.bf16.msra.mxu0 0
    %275 = vmatprep.subr.bf16.mxu0 0
    %276 = vmatpush1.bf16.msra.mxu0 0
    %277 = vmatprep.subr.bf16.mxu0 0
    %278 = vmatpush1.bf16.msra.mxu0 0
    %279 = vmatprep.subr.bf16.mxu0 0
    %280 = vmatpush1.bf16.msra.mxu0 0
    %281 = vmatprep.subr.bf16.mxu0 0
    %282 = vmatpush1.bf16.msra.mxu0 0
    %283 = vmatprep.subr.bf16.mxu0 0
    %284 = vmatpush1.bf16.msra.mxu0 0
    %285 = vmatprep.subr.bf16.mxu0 0
    %286 = vmatpush1.bf16.msra.mxu0 0
    %287 = vmatprep.subr.bf16.mxu0 0
    %288 = vmatpush1.bf16.msra.mxu0 0
    %289 = vmatprep.subr.bf16.mxu0 0
    %290 = vmatpush1.bf16.msra.mxu0 0
    %291 = vmatprep.subr.bf16.mxu0 0
    %292 = vmatpush1.bf16.msra.mxu0 0
    %293 = vmatprep.subr.bf16.mxu0 0
    %294 = vmatpush1.bf16.msra.mxu0 0
    %295 = vmatprep.subr.bf16.mxu0 0
    %296 = vmatpush1.bf16.msra.mxu0 0
    %297 = vmatprep.subr.bf16.mxu0 0
    %298 = vmatpush1.bf16.msra.mxu0 0
    %299 = vmatprep.subr.bf16.mxu0 0
    %300 = vmatpush1.bf16.msra.mxu0 0
    %301 = vmatprep.mubr.bf16.mxu0 0
    %302 = vmatmul.mubr.bf16.gmra.mrb[0].mxu0 %v267
    %v303 = vpop.f32.mrb[0].mxu0
    %v304 = vadd.f32 0.0, %v303
    %v305 = vpop.f32.mrb[0].mxu0
    %v306 = vpop.f32.mrb[0].mxu0
    %v307 = vpop.f32.mrb[0].mxu0
    %308 = vdwg.mxu0
    %v309 = vadd.f32 %v261, %v304
    %v310 = vadd.f32 %v309, %v309
    %v311 = vsel %vm118, %v310, %v309
    %v312 = vxor.u32 %v311, 2147483648
    %v313 = vmul.f32 %v312, 1.442695
    %v314 = vpow.pop %v313
    %v315 = vadd.f32 %v314, 1.0
    %v316 = vrcp.pop %v315
    %v317 = vmul.f32 1.0, %v316
    %v318 = vadd.f32 %v317, %v317
    %v319 = vsub.f32 %v318, 1.0
    %v320 = vsel %vm118, %v319, %v317
    %v321 = vmul.f32 %v320, %v227
    %323 = vrot.lane.b32.xlu0 %v320, 64
    %v324 = vpop.permute.xlu0 %323
    %v326 = vmul.f32 %v320, %v324
    %328 = vrot.lane.b32.xlu0 %v326, 32
    %v329 = vpop.permute.xlu0 %328
    %v331 = vadd.f32 %v321, %v329
    %v332 = vtanh.pop %v331
    %334 = vrot.lane.b32.xlu0 %v332, 64
    %v335 = vpop.permute.xlu0 %334
    %v337 = vmul.f32 %v320, %v335
    %s338 = sld [smem:[#allocation3 + $0x2]]
    %s339 = sld [smem:[#allocation8 + $0x2]]
    %s340 = scalar_lea.vmem [#allocation10], %s338
    %v341 = vld [vmem:[%s340] sm:$0x1]
    %v342 = vstv %s339
    %v343 = vmul.f32 %v342, %v111
    %v344 = vadd.f32 %v341, %v343
    %v346 = vlaneseq
    %v347 = vshrl.u32 %v346, 7
    %v348 = vsub.s32 0, %v347
    %v349 = vrot.slane %v344, %v348
    %v351 = vsel %vm126, %v349, 0.0
    %s352 = sld [smem:[#allocation3 + $0x82]]
    %s353 = sld [smem:[#allocation8 + $0x82]]
    %s354 = scalar_lea.vmem [#allocation10], %s352
    %v355 = vld [vmem:[%s354] sm:$0x1]
    %v356 = vstv %s353
    %v357 = vmul.f32 %v356, %v111
    %v358 = vadd.f32 %v355, %v357
    %v360 = vlaneseq
    %v361 = vshrl.u32 %v360, 7
    %v362 = vsub.s32 0, %v361
    %v363 = vrot.slane %v358, %v362
    %v365 = vsel %vm141, %v363, %v351
    %v366 = vpack.c.bf16 %v337, %v337
    %368 = vrot.lane.b32.xlu0 %v366, 32
    %v369 = vpop.permute.xlu0 %368
    %v371 = vsel %vm161, %v369, 0
    %373 = vmatprep.subr.bf16.mxu0 0
    %374 = vmatpush1.bf16.msra.mxu0 %v157
    %375 = vmatprep.subr.bf16.mxu0 0
    %376 = vmatpush1.bf16.msra.mxu0 %v158
    %377 = vmatprep.subr.bf16.mxu0 0
    %378 = vmatpush1.bf16.msra.mxu0 0
    %379 = vmatprep.subr.bf16.mxu0 0
    %380 = vmatpush1.bf16.msra.mxu0 0
    %381 = vmatprep.subr.bf16.mxu0 0
    %382 = vmatpush1.bf16.msra.mxu0 0
    %383 = vmatprep.subr.bf16.mxu0 0
    %384 = vmatpush1.bf16.msra.mxu0 0
    %385 = vmatprep.subr.bf16.mxu0 0
    %386 = vmatpush1.bf16.msra.mxu0 0
    %387 = vmatprep.subr.bf16.mxu0 0
    %388 = vmatpush1.bf16.msra.mxu0 0
    %389 = vmatprep.subr.bf16.mxu0 0
    %390 = vmatpush1.bf16.msra.mxu0 0
    %391 = vmatprep.subr.bf16.mxu0 0
    %392 = vmatpush1.bf16.msra.mxu0 0
    %393 = vmatprep.subr.bf16.mxu0 0
    %394 = vmatpush1.bf16.msra.mxu0 0
    %395 = vmatprep.subr.bf16.mxu0 0
    %396 = vmatpush1.bf16.msra.mxu0 0
    %397 = vmatprep.subr.bf16.mxu0 0
    %398 = vmatpush1.bf16.msra.mxu0 0
    %399 = vmatprep.subr.bf16.mxu0 0
    %400 = vmatpush1.bf16.msra.mxu0 0
    %401 = vmatprep.subr.bf16.mxu0 0
    %402 = vmatpush1.bf16.msra.mxu0 0
    %403 = vmatprep.subr.bf16.mxu0 0
    %404 = vmatpush1.bf16.msra.mxu0 0
    %405 = vmatprep.mubr.bf16.mxu0 0
    %406 = vmatmul.mubr.bf16.gmra.mrb[0].mxu0 %v371
    %v407 = vpop.f32.mrb[0].mxu0
    %v408 = vadd.f32 0.0, %v407
    %v409 = vpop.f32.mrb[0].mxu0
    %v410 = vpop.f32.mrb[0].mxu0
    %v411 = vpop.f32.mrb[0].mxu0
    %412 = vdwg.mxu0
    %v413 = vadd.f32 %v365, %v408
    %v414 = vadd.f32 %v413, %v413
    %v415 = vsel %vm118, %v414, %v413
    %v416 = vxor.u32 %v415, 2147483648
    %v417 = vmul.f32 %v416, 1.442695
    %v418 = vpow.pop %v417
    %v419 = vadd.f32 %v418, 1.0
    %v420 = vrcp.pop %v419
    %v421 = vmul.f32 1.0, %v420
    %v422 = vadd.f32 %v421, %v421
    %v423 = vsub.f32 %v422, 1.0
    %v424 = vsel %vm118, %v423, %v421
    %v425 = vmul.f32 %v424, %v331
    %427 = vrot.lane.b32.xlu0 %v424, 64
    %v428 = vpop.permute.xlu0 %427
    %v430 = vmul.f32 %v424, %v428
    %432 = vrot.lane.b32.xlu0 %v430, 32
    %v433 = vpop.permute.xlu0 %432
    %v435 = vadd.f32 %v425, %v433
    %v436 = vtanh.pop %v435
    %438 = vrot.lane.b32.xlu0 %v436, 64
    %v439 = vpop.permute.xlu0 %438
    %v441 = vmul.f32 %v424, %v439
    %s442 = sld [smem:[#allocation3 + $0x3]]
    %s443 = sld [smem:[#allocation8 + $0x3]]
    %s444 = scalar_lea.vmem [#allocation10], %s442
    %v445 = vld [vmem:[%s444] sm:$0x1]
    %v446 = vstv %s443
    %v447 = vmul.f32 %v446, %v111
    %v448 = vadd.f32 %v445, %v447
    %v450 = vlaneseq
    %v451 = vshrl.u32 %v450, 7
    %v452 = vsub.s32 0, %v451
    %v453 = vrot.slane %v448, %v452
    %v455 = vsel %vm126, %v453, 0.0
    %s456 = sld [smem:[#allocation3 + $0x83]]
    %s457 = sld [smem:[#allocation8 + $0x83]]
    %s458 = scalar_lea.vmem [#allocation10], %s456
    %v459 = vld [vmem:[%s458] sm:$0x1]
    %v460 = vstv %s457
    %v461 = vmul.f32 %v460, %v111
    %v462 = vadd.f32 %v459, %v461
    %v464 = vlaneseq
    %v465 = vshrl.u32 %v464, 7
    %v466 = vsub.s32 0, %v465
    %v467 = vrot.slane %v462, %v466
    %v469 = vsel %vm141, %v467, %v455
    %v470 = vpack.c.bf16 %v441, %v441
    %472 = vrot.lane.b32.xlu0 %v470, 32
    %v473 = vpop.permute.xlu0 %472
    %v475 = vsel %vm161, %v473, 0
    %477 = vmatprep.subr.bf16.mxu0 0
    %478 = vmatpush1.bf16.msra.mxu0 %v157
    %479 = vmatprep.subr.bf16.mxu0 0
    %480 = vmatpush1.bf16.msra.mxu0 %v158
    %481 = vmatprep.subr.bf16.mxu0 0
    %482 = vmatpush1.bf16.msra.mxu0 0
    %483 = vmatprep.subr.bf16.mxu0 0
    %484 = vmatpush1.bf16.msra.mxu0 0
    %485 = vmatprep.subr.bf16.mxu0 0
    %486 = vmatpush1.bf16.msra.mxu0 0
    %487 = vmatprep.subr.bf16.mxu0 0
    %488 = vmatpush1.bf16.msra.mxu0 0
    %489 = vmatprep.subr.bf16.mxu0 0
    %490 = vmatpush1.bf16.msra.mxu0 0
    %491 = vmatprep.subr.bf16.mxu0 0
    %492 = vmatpush1.bf16.msra.mxu0 0
    %493 = vmatprep.subr.bf16.mxu0 0
    %494 = vmatpush1.bf16.msra.mxu0 0
    %495 = vmatprep.subr.bf16.mxu0 0
    %496 = vmatpush1.bf16.msra.mxu0 0
    %497 = vmatprep.subr.bf16.mxu0 0
    %498 = vmatpush1.bf16.msra.mxu0 0
    %499 = vmatprep.subr.bf16.mxu0 0
    %500 = vmatpush1.bf16.msra.mxu0 0
    %501 = vmatprep.subr.bf16.mxu0 0
    %502 = vmatpush1.bf16.msra.mxu0 0
    %503 = vmatprep.subr.bf16.mxu0 0
    %504 = vmatpush1.bf16.msra.mxu0 0
    %505 = vmatprep.subr.bf16.mxu0 0
    %506 = vmatpush1.bf16.msra.mxu0 0
    %507 = vmatprep.subr.bf16.mxu0 0
    %508 = vmatpush1.bf16.msra.mxu0 0
    %509 = vmatprep.mubr.bf16.mxu0 0
    %510 = vmatmul.mubr.bf16.gmra.mrb[0].mxu0 %v475
    %v511 = vpop.f32.mrb[0].mxu0
    %v512 = vadd.f32 0.0, %v511
    %v513 = vpop.f32.mrb[0].mxu0
    %v514 = vpop.f32.mrb[0].mxu0
    %v515 = vpop.f32.mrb[0].mxu0
    %516 = vdwg.mxu0
    %v517 = vadd.f32 %v469, %v512
    %v518 = vadd.f32 %v517, %v517
    %v519 = vsel %vm118, %v518, %v517
    %v520 = vxor.u32 %v519, 2147483648
    %v521 = vmul.f32 %v520, 1.442695
    %v522 = vpow.pop %v521
    %v523 = vadd.f32 %v522, 1.0
    %v524 = vrcp.pop %v523
    %v525 = vmul.f32 1.0, %v524
    %v526 = vadd.f32 %v525, %v525
    %v527 = vsub.f32 %v526, 1.0
    %v528 = vsel %vm118, %v527, %v525
    %v529 = vmul.f32 %v528, %v435
    %531 = vrot.lane.b32.xlu0 %v528, 64
    %v532 = vpop.permute.xlu0 %531
    %v534 = vmul.f32 %v528, %v532
    %536 = vrot.lane.b32.xlu0 %v534, 32
    %v537 = vpop.permute.xlu0 %536
    %v539 = vadd.f32 %v529, %v537
    %v540 = vtanh.pop %v539
    %542 = vrot.lane.b32.xlu0 %v540, 64
    %v543 = vpop.permute.xlu0 %542
    %v545 = vmul.f32 %v528, %v543
    %s546 = sld [smem:[#allocation3 + $0x4]]
    %s547 = sld [smem:[#allocation8 + $0x4]]
    %s548 = scalar_lea.vmem [#allocation10], %s546
    %v549 = vld [vmem:[%s548] sm:$0x1]
    %v550 = vstv %s547
    %v551 = vmul.f32 %v550, %v111
    %v552 = vadd.f32 %v549, %v551
    %v554 = vlaneseq
    %v555 = vshrl.u32 %v554, 7
    %v556 = vsub.s32 0, %v555
    %v557 = vrot.slane %v552, %v556
    %v559 = vsel %vm126, %v557, 0.0
    %s560 = sld [smem:[#allocation3 + $0x84]]
    %s561 = sld [smem:[#allocation8 + $0x84]]
    %s562 = scalar_lea.vmem [#allocation10], %s560
    %v563 = vld [vmem:[%s562] sm:$0x1]
    %v564 = vstv %s561
    %v565 = vmul.f32 %v564, %v111
    %v566 = vadd.f32 %v563, %v565
    %v568 = vlaneseq
    %v569 = vshrl.u32 %v568, 7
    %v570 = vsub.s32 0, %v569
    %v571 = vrot.slane %v566, %v570
    %v573 = vsel %vm141, %v571, %v559
    %v574 = vpack.c.bf16 %v545, %v545
    %576 = vrot.lane.b32.xlu0 %v574, 32
    %v577 = vpop.permute.xlu0 %576
    %v579 = vsel %vm161, %v577, 0
    %581 = vmatprep.subr.bf16.mxu0 0
    %582 = vmatpush1.bf16.msra.mxu0 %v157
    %583 = vmatprep.subr.bf16.mxu0 0
    %584 = vmatpush1.bf16.msra.mxu0 %v158
    %585 = vmatprep.subr.bf16.mxu0 0
    %586 = vmatpush1.bf16.msra.mxu0 0
    %587 = vmatprep.subr.bf16.mxu0 0
    %588 = vmatpush1.bf16.msra.mxu0 0
    %589 = vmatprep.subr.bf16.mxu0 0
    %590 = vmatpush1.bf16.msra.mxu0 0
    %591 = vmatprep.subr.bf16.mxu0 0
    %592 = vmatpush1.bf16.msra.mxu0 0
    %593 = vmatprep.subr.bf16.mxu0 0
    %594 = vmatpush1.bf16.msra.mxu0 0
    %595 = vmatprep.subr.bf16.mxu0 0
    %596 = vmatpush1.bf16.msra.mxu0 0
    %597 = vmatprep.subr.bf16.mxu0 0
    %598 = vmatpush1.bf16.msra.mxu0 0
    %599 = vmatprep.subr.bf16.mxu0 0
    %600 = vmatpush1.bf16.msra.mxu0 0
    %601 = vmatprep.subr.bf16.mxu0 0
    %602 = vmatpush1.bf16.msra.mxu0 0
    %603 = vmatprep.subr.bf16.mxu0 0
    %604 = vmatpush1.bf16.msra.mxu0 0
    %605 = vmatprep.subr.bf16.mxu0 0
    %606 = vmatpush1.bf16.msra.mxu0 0
    %607 = vmatprep.subr.bf16.mxu0 0
    %608 = vmatpush1.bf16.msra.mxu0 0
    %609 = vmatprep.subr.bf16.mxu0 0
    %610 = vmatpush1.bf16.msra.mxu0 0
    %611 = vmatprep.subr.bf16.mxu0 0
    %612 = vmatpush1.bf16.msra.mxu0 0
    %613 = vmatprep.mubr.bf16.mxu0 0
    %614 = vmatmul.mubr.bf16.gmra.mrb[0].mxu0 %v579
    %v615 = vpop.f32.mrb[0].mxu0
    %v616 = vadd.f32 0.0, %v615
    %v617 = vpop.f32.mrb[0].mxu0
    %v618 = vpop.f32.mrb[0].mxu0
    %v619 = vpop.f32.mrb[0].mxu0
    %620 = vdwg.mxu0
    %v621 = vadd.f32 %v573, %v616
    %v622 = vadd.f32 %v621, %v621
    %v623 = vsel %vm118, %v622, %v621
    %v624 = vxor.u32 %v623, 2147483648
    %v625 = vmul.f32 %v624, 1.442695
    %v626 = vpow.pop %v625
    %v627 = vadd.f32 %v626, 1.0
    %v628 = vrcp.pop %v627
    %v629 = vmul.f32 1.0, %v628
    %v630 = vadd.f32 %v629, %v629
    %v631 = vsub.f32 %v630, 1.0
    %v632 = vsel %vm118, %v631, %v629
    %v633 = vmul.f32 %v632, %v539
    %635 = vrot.lane.b32.xlu0 %v632, 64
    %v636 = vpop.permute.xlu0 %635
    %v638 = vmul.f32 %v632, %v636
    %640 = vrot.lane.b32.xlu0 %v638, 32
    %v641 = vpop.permute.xlu0 %640
    %v643 = vadd.f32 %v633, %v641
    %v644 = vtanh.pop %v643
    %646 = vrot.lane.b32.xlu0 %v644, 64
    %v647 = vpop.permute.xlu0 %646
    %v649 = vmul.f32 %v632, %v647
    %s650 = sld [smem:[#allocation3 + $0x5]]
    %s651 = sld [smem:[#allocation8 + $0x5]]
    %s652 = scalar_lea.vmem [#allocation10], %s650
    %v653 = vld [vmem:[%s652] sm:$0x1]
    %v654 = vstv %s651
    %v655 = vmul.f32 %v654, %v111
    %v656 = vadd.f32 %v653, %v655
    %v658 = vlaneseq
    %v659 = vshrl.u32 %v658, 7
    %v660 = vsub.s32 0, %v659
    %v661 = vrot.slane %v656, %v660
    %v663 = vsel %vm126, %v661, 0.0
    %s664 = sld [smem:[#allocation3 + $0x85]]
    %s665 = sld [smem:[#allocation8 + $0x85]]
    %s666 = scalar_lea.vmem [#allocation10], %s664
    %v667 = vld [vmem:[%s666] sm:$0x1]
    %v668 = vstv %s665
    %v669 = vmul.f32 %v668, %v111
    %v670 = vadd.f32 %v667, %v669
    %v672 = vlaneseq
    %v673 = vshrl.u32 %v672, 7
    %v674 = vsub.s32 0, %v673
    %v675 = vrot.slane %v670, %v674
    %v677 = vsel %vm141, %v675, %v663
    %v678 = vpack.c.bf16 %v649, %v649
    %680 = vrot.lane.b32.xlu0 %v678, 32
    %v681 = vpop.permute.xlu0 %680
    %v683 = vsel %vm161, %v681, 0
    %685 = vmatprep.subr.bf16.mxu0 0
    %686 = vmatpush1.bf16.msra.mxu0 %v157
    %687 = vmatprep.subr.bf16.mxu0 0
    %688 = vmatpush1.bf16.msra.mxu0 %v158
    %689 = vmatprep.subr.bf16.mxu0 0
    %690 = vmatpush1.bf16.msra.mxu0 0
    %691 = vmatprep.subr.bf16.mxu0 0
    %692 = vmatpush1.bf16.msra.mxu0 0
    %693 = vmatprep.subr.bf16.mxu0 0
    %694 = vmatpush1.bf16.msra.mxu0 0
    %695 = vmatprep.subr.bf16.mxu0 0
    %696 = vmatpush1.bf16.msra.mxu0 0
    %697 = vmatprep.subr.bf16.mxu0 0
    %698 = vmatpush1.bf16.msra.mxu0 0
    %699 = vmatprep.subr.bf16.mxu0 0
    %700 = vmatpush1.bf16.msra.mxu0 0
    %701 = vmatprep.subr.bf16.mxu0 0
    %702 = vmatpush1.bf16.msra.mxu0 0
    %703 = vmatprep.subr.bf16.mxu0 0
    %704 = vmatpush1.bf16.msra.mxu0 0
    %705 = vmatprep.subr.bf16.mxu0 0
    %706 = vmatpush1.bf16.msra.mxu0 0
    %707 = vmatprep.subr.bf16.mxu0 0
    %708 = vmatpush1.bf16.msra.mxu0 0
    %709 = vmatprep.subr.bf16.mxu0 0
    %710 = vmatpush1.bf16.msra.mxu0 0
    %711 = vmatprep.subr.bf16.mxu0 0
    %712 = vmatpush1.bf16.msra.mxu0 0
    %713 = vmatprep.subr.bf16.mxu0 0
    %714 = vmatpush1.bf16.msra.mxu0 0
    %715 = vmatprep.subr.bf16.mxu0 0
    %716 = vmatpush1.bf16.msra.mxu0 0
    %717 = vmatprep.mubr.bf16.mxu0 0
    %718 = vmatmul.mubr.bf16.gmra.mrb[0].mxu0 %v683
    %v719 = vpop.f32.mrb[0].mxu0
    %v720 = vadd.f32 0.0, %v719
    %v721 = vpop.f32.mrb[0].mxu0
    %v722 = vpop.f32.mrb[0].mxu0
    %v723 = vpop.f32.mrb[0].mxu0
    %724 = vdwg.mxu0
    %v725 = vadd.f32 %v677, %v720
    %v726 = vadd.f32 %v725, %v725
    %v727 = vsel %vm118, %v726, %v725
    %v728 = vxor.u32 %v727, 2147483648
    %v729 = vmul.f32 %v728, 1.442695
    %v730 = vpow.pop %v729
    %v731 = vadd.f32 %v730, 1.0
    %v732 = vrcp.pop %v731
    %v733 = vmul.f32 1.0, %v732
    %v734 = vadd.f32 %v733, %v733
    %v735 = vsub.f32 %v734, 1.0
    %v736 = vsel %vm118, %v735, %v733
    %v737 = vmul.f32 %v736, %v643
    %739 = vrot.lane.b32.xlu0 %v736, 64
    %v740 = vpop.permute.xlu0 %739
    %v742 = vmul.f32 %v736, %v740
    %744 = vrot.lane.b32.xlu0 %v742, 32
    %v745 = vpop.permute.xlu0 %744
    %v747 = vadd.f32 %v737, %v745
    %v748 = vtanh.pop %v747
    %750 = vrot.lane.b32.xlu0 %v748, 64
    %v751 = vpop.permute.xlu0 %750
    %v753 = vmul.f32 %v736, %v751
    %s754 = sld [smem:[#allocation3 + $0x6]]
    %s755 = sld [smem:[#allocation8 + $0x6]]
    %s756 = scalar_lea.vmem [#allocation10], %s754
    %v757 = vld [vmem:[%s756] sm:$0x1]
    %v758 = vstv %s755
    %v759 = vmul.f32 %v758, %v111
    %v760 = vadd.f32 %v757, %v759
    %v762 = vlaneseq
    %v763 = vshrl.u32 %v762, 7
    %v764 = vsub.s32 0, %v763
    %v765 = vrot.slane %v760, %v764
    %v767 = vsel %vm126, %v765, 0.0
    %s768 = sld [smem:[#allocation3 + $0x86]]
    %s769 = sld [smem:[#allocation8 + $0x86]]
    %s770 = scalar_lea.vmem [#allocation10], %s768
    %v771 = vld [vmem:[%s770] sm:$0x1]
    %v772 = vstv %s769
    %v773 = vmul.f32 %v772, %v111
    %v774 = vadd.f32 %v771, %v773
    %v776 = vlaneseq
    %v777 = vshrl.u32 %v776, 7
    %v778 = vsub.s32 0, %v777
    %v779 = vrot.slane %v774, %v778
    %v781 = vsel %vm141, %v779, %v767
    %v782 = vpack.c.bf16 %v753, %v753
    %784 = vrot.lane.b32.xlu0 %v782, 32
    %v785 = vpop.permute.xlu0 %784
    %v787 = vsel %vm161, %v785, 0
    %789 = vmatprep.subr.bf16.mxu0 0
    %790 = vmatpush1.bf16.msra.mxu0 %v157
    %791 = vmatprep.subr.bf16.mxu0 0
    %792 = vmatpush1.bf16.msra.mxu0 %v158
    %793 = vmatprep.subr.bf16.mxu0 0
    %794 = vmatpush1.bf16.msra.mxu0 0
    %795 = vmatprep.subr.bf16.mxu0 0
    %796 = vmatpush1.bf16.msra.mxu0 0
    %797 = vmatprep.subr.bf16.mxu0 0
    %798 = vmatpush1.bf16.msra.mxu0 0
    %799 = vmatprep.subr.bf16.mxu0 0
    %800 = vmatpush1.bf16.msra.mxu0 0
    %801 = vmatprep.subr.bf16.mxu0 0
    %802 = vmatpush1.bf16.msra.mxu0 0
    %803 = vmatprep.subr.bf16.mxu0 0
    %804 = vmatpush1.bf16.msra.mxu0 0
    %805 = vmatprep.subr.bf16.mxu0 0
    %806 = vmatpush1.bf16.msra.mxu0 0
    %807 = vmatprep.subr.bf16.mxu0 0
    %808 = vmatpush1.bf16.msra.mxu0 0
    %809 = vmatprep.subr.bf16.mxu0 0
    %810 = vmatpush1.bf16.msra.mxu0 0
    %811 = vmatprep.subr.bf16.mxu0 0
    %812 = vmatpush1.bf16.msra.mxu0 0
    %813 = vmatprep.subr.bf16.mxu0 0
    %814 = vmatpush1.bf16.msra.mxu0 0
    %815 = vmatprep.subr.bf16.mxu0 0
    %816 = vmatpush1.bf16.msra.mxu0 0
    %817 = vmatprep.subr.bf16.mxu0 0
    %818 = vmatpush1.bf16.msra.mxu0 0
    %819 = vmatprep.subr.bf16.mxu0 0
    %820 = vmatpush1.bf16.msra.mxu0 0
    %821 = vmatprep.mubr.bf16.mxu0 0
    %822 = vmatmul.mubr.bf16.gmra.mrb[0].mxu0 %v787
    %v823 = vpop.f32.mrb[0].mxu0
    %v824 = vadd.f32 0.0, %v823
    %v825 = vpop.f32.mrb[0].mxu0
    %v826 = vpop.f32.mrb[0].mxu0
    %v827 = vpop.f32.mrb[0].mxu0
    %828 = vdwg.mxu0
    %v829 = vadd.f32 %v781, %v824
    %v830 = vadd.f32 %v829, %v829
    %v831 = vsel %vm118, %v830, %v829
    %v832 = vxor.u32 %v831, 2147483648
    %v833 = vmul.f32 %v832, 1.442695
    %v834 = vpow.pop %v833
    %v835 = vadd.f32 %v834, 1.0
    %v836 = vrcp.pop %v835
    %v837 = vmul.f32 1.0, %v836
    %v838 = vadd.f32 %v837, %v837
    %v839 = vsub.f32 %v838, 1.0
    %v840 = vsel %vm118, %v839, %v837
    %v841 = vmul.f32 %v840, %v747
    %843 = vrot.lane.b32.xlu0 %v840, 64
    %v844 = vpop.permute.xlu0 %843
    %v846 = vmul.f32 %v840, %v844
    %848 = vrot.lane.b32.xlu0 %v846, 32
    %v849 = vpop.permute.xlu0 %848
    %v851 = vadd.f32 %v841, %v849
    %v852 = vtanh.pop %v851
    %854 = vrot.lane.b32.xlu0 %v852, 64
    %v855 = vpop.permute.xlu0 %854
    %v857 = vmul.f32 %v840, %v855
    %s858 = sld [smem:[#allocation13]]
    %s859 = sld [smem:[#allocation13 + $0x1]]
    %s860 = sld [smem:[#allocation8 + $0x7]]
    %v861 = vstv %s860
    %v862 = vsel %vm126, %v861, 1.0
    %s863 = sld [smem:[#allocation8 + $0x87]]
    %v864 = vstv %s863
    %v865 = vsel %vm141, %v864, %v862
    %v866 = vstv %s858
    %v867 = vmul.f32 %v865, %v866
    %v868 = vstv %s859
    %v869 = vadd.f32 %v867, %v868
    %v870 = vld [vmem:[%s7] sm:$0x1]
    %v871 = vpack.c.bf16 %v857, %v857
    %v872 = vld [vmem:[%s6] sm:$0xf]
    %v873 = vld [vmem:[%s6 + $0x4] sm:$0xf]
    %v874 = vld [vmem:[%s6 + $0x8] sm:$0xf]
    %v875 = vld [vmem:[%s6 + $0xc] sm:$0xf]
    %v877 = vlaneseq
    %v878 = vshrl.u32 %v877, 7
    %v879 = vsub.s32 0, %v878
    %v880 = vrot.slane %v870, %v879
    %v882 = vmul.f32 %v869, %v880
    %884 = vrot.lane.b32.xlu0 %v871, 32
    %v885 = vpop.permute.xlu0 %884
    %v890 = vunpack.c.l.b16 %v872
    %v891 = vunpack.c.l.b16 %v873
    %v892 = vunpack.c.l.b16 %v874
    %v893 = vunpack.c.l.b16 %v875
    %v894 = vpack.c.b16 %v891, %v890
    %v895 = vpack.c.b16 %v893, %v892
    %v899 = vsel %vm161, %v885, 0
    %901 = vmatprep.subr.bf16.mxu0 0
    %902 = vmatpush1.bf16.msra.mxu0 %v894
    %903 = vmatprep.subr.bf16.mxu0 0
    %904 = vmatpush1.bf16.msra.mxu0 %v895
    %905 = vmatprep.subr.bf16.mxu0 0
    %906 = vmatpush1.bf16.msra.mxu0 0
    %907 = vmatprep.subr.bf16.mxu0 0
    %908 = vmatpush1.bf16.msra.mxu0 0
    %909 = vmatprep.subr.bf16.mxu0 0
    %910 = vmatpush1.bf16.msra.mxu0 0
    %911 = vmatprep.subr.bf16.mxu0 0
    %912 = vmatpush1.bf16.msra.mxu0 0
    %913 = vmatprep.subr.bf16.mxu0 0
    %914 = vmatpush1.bf16.msra.mxu0 0
    %915 = vmatprep.subr.bf16.mxu0 0
    %916 = vmatpush1.bf16.msra.mxu0 0
    %917 = vmatprep.subr.bf16.mxu0 0
    %918 = vmatpush1.bf16.msra.mxu0 0
    %919 = vmatprep.subr.bf16.mxu0 0
    %920 = vmatpush1.bf16.msra.mxu0 0
    %921 = vmatprep.subr.bf16.mxu0 0
    %922 = vmatpush1.bf16.msra.mxu0 0
    %923 = vmatprep.subr.bf16.mxu0 0
    %924 = vmatpush1.bf16.msra.mxu0 0
    %925 = vmatprep.subr.bf16.mxu0 0
    %926 = vmatpush1.bf16.msra.mxu0 0
    %927 = vmatprep.subr.bf16.mxu0 0
    %928 = vmatpush1.bf16.msra.mxu0 0
    %929 = vmatprep.subr.bf16.mxu0 0
    %930 = vmatpush1.bf16.msra.mxu0 0
    %931 = vmatprep.subr.bf16.mxu0 0
    %932 = vmatpush1.bf16.msra.mxu0 0
    %933 = vmatprep.mubr.bf16.mxu0 0
    %934 = vmatmul.mubr.bf16.gmra.mrb[0].mxu0 %v899
    %v935 = vpop.f32.mrb[0].mxu0
    %v936 = vadd.f32 %v882, %v935
    %v937 = vpop.f32.mrb[0].mxu0
    %v938 = vpop.f32.mrb[0].mxu0
    %v939 = vpop.f32.mrb[0].mxu0
    %940 = vdwg.mxu0
    %v941 = vld [vmem:[%s8] sm:$0x1]
    %v943 = vlaneseq
    %v944 = vshrl.u32 %v943, 7
    %v945 = vsub.s32 0, %v944
    %v946 = vrot.slane %v941, %v945
    %v948 = vadd.f32 %v936, %v946
    %v949 = vtanh.pop %v948
    %v950 = vmul.f32 %v949, %v949
    %v951 = vsub.f32 1.0, %v950
    %v952 = vmul.f32 %v866, %v870
    %v954 = vlaneseq
    %v955 = vshrl.u32 %v954, 7
    %v956 = vsub.s32 0, %v955
    %v957 = vrot.slane %v952, %v956
    %v959 = vmul.f32 %v951, %v957
    %v960 = vpack.c.bf16 %v959, %v949
    %v961 = vld [vmem:[%s9] sm:$0xf]
    %v962 = vld [vmem:[%s9 + $0x4] sm:$0xf]
    %v963 = vld [vmem:[%s9 + $0x8] sm:$0xf]
    %v964 = vld [vmem:[%s9 + $0xc] sm:$0xf]
    %v969 = vunpack.c.l.b16 %v961
    %v970 = vunpack.c.l.b16 %v962
    %v971 = vunpack.c.l.b16 %v963
    %v972 = vunpack.c.l.b16 %v964
    %v973 = vpack.c.b16 %v970, %v969
    %v974 = vpack.c.b16 %v972, %v971
    %v978 = vsel %vm161, %v960, 0
    %980 = vmatprep.subr.bf16.mxu0 0
    %981 = vmatpush1.bf16.msra.mxu0 %v973
    %982 = vmatprep.subr.bf16.mxu0 0
    %983 = vmatpush1.bf16.msra.mxu0 %v974
    %984 = vmatprep.subr.bf16.mxu0 0
    %985 = vmatpush1.bf16.msra.mxu0 0
    %986 = vmatprep.subr.bf16.mxu0 0
    %987 = vmatpush1.bf16.msra.mxu0 0
    %988 = vmatprep.subr.bf16.mxu0 0
    %989 = vmatpush1.bf16.msra.mxu0 0
    %990 = vmatprep.subr.bf16.mxu0 0
    %991 = vmatpush1.bf16.msra.mxu0 0
    %992 = vmatprep.subr.bf16.mxu0 0
    %993 = vmatpush1.bf16.msra.mxu0 0
    %994 = vmatprep.subr.bf16.mxu0 0
    %995 = vmatpush1.bf16.msra.mxu0 0
    %996 = vmatprep.subr.bf16.mxu0 0
    %997 = vmatpush1.bf16.msra.mxu0 0
    %998 = vmatprep.subr.bf16.mxu0 0
    %999 = vmatpush1.bf16.msra.mxu0 0
    %1000 = vmatprep.subr.bf16.mxu0 0
    %1001 = vmatpush1.bf16.msra.mxu0 0
    %1002 = vmatprep.subr.bf16.mxu0 0
    %1003 = vmatpush1.bf16.msra.mxu0 0
    %1004 = vmatprep.subr.bf16.mxu0 0
    %1005 = vmatpush1.bf16.msra.mxu0 0
    %1006 = vmatprep.subr.bf16.mxu0 0
    %1007 = vmatpush1.bf16.msra.mxu0 0
    %1008 = vmatprep.subr.bf16.mxu0 0
    %1009 = vmatpush1.bf16.msra.mxu0 0
    %1010 = vmatprep.subr.bf16.mxu0 0
    %1011 = vmatpush1.bf16.msra.mxu0 0
    %1012 = vmatprep.mubr.bf16.mxu0 0
    %1013 = vmatmul.mubr.bf16.gmra.mrb[0].mxu0 %v978
    %v1014 = vpop.f32.mrb[0].mxu0
    %v1015 = vadd.f32 0.0, %v1014
    %v1016 = vpop.f32.mrb[0].mxu0
    %v1017 = vpop.f32.mrb[0].mxu0
    %v1018 = vadd.f32 0.0, %v1017
    %v1019 = vpop.f32.mrb[0].mxu0
    %1020 = vdwg.mxu0
    %v1021 = vld [vmem:[%s10] sm:$0x1]
    %v1023 = vlaneseq
    %v1024 = vshrl.u32 %v1023, 7
    %v1025 = vsub.s32 0, %v1024
    %v1026 = vrot.slane %v1021, %v1025
    %v1028 = vadd.f32 %v1015, %v1026
    %v1029 = vtanh.pop %v1028
    %v1030 = vmul.f32 %v1029, %v1029
    %v1031 = vsub.f32 1.0, %v1030
    %v1032 = vmul.f32 %v1031, %v1018
    %v1033 = vpack.c.bf16 %v1032, %v1029
    %v1034 = vld [vmem:[%s11] sm:$0xf]
    %v1035 = vld [vmem:[%s11 + $0x4] sm:$0xf]
    %v1036 = vld [vmem:[%s11 + $0x8] sm:$0xf]
    %v1037 = vld [vmem:[%s11 + $0xc] sm:$0xf]
    %v1042 = vunpack.c.l.b16 %v1034
    %v1043 = vunpack.c.l.b16 %v1035
    %v1044 = vunpack.c.l.b16 %v1036
    %v1045 = vunpack.c.l.b16 %v1037
    %v1046 = vpack.c.b16 %v1043, %v1042
    %v1047 = vpack.c.b16 %v1045, %v1044
    %v1051 = vsel %vm161, %v1033, 0
    %1053 = vmatprep.subr.bf16.mxu0 0
    %1054 = vmatpush1.bf16.msra.mxu0 %v1046
    %1055 = vmatprep.subr.bf16.mxu0 0
    %1056 = vmatpush1.bf16.msra.mxu0 %v1047
    %1057 = vmatprep.subr.bf16.mxu0 0
    %1058 = vmatpush1.bf16.msra.mxu0 0
    %1059 = vmatprep.subr.bf16.mxu0 0
    %1060 = vmatpush1.bf16.msra.mxu0 0
    %1061 = vmatprep.subr.bf16.mxu0 0
    %1062 = vmatpush1.bf16.msra.mxu0 0
    %1063 = vmatprep.subr.bf16.mxu0 0
    %1064 = vmatpush1.bf16.msra.mxu0 0
    %1065 = vmatprep.subr.bf16.mxu0 0
    %1066 = vmatpush1.bf16.msra.mxu0 0
    %1067 = vmatprep.subr.bf16.mxu0 0
    %1068 = vmatpush1.bf16.msra.mxu0 0
    %1069 = vmatprep.subr.bf16.mxu0 0
    %1070 = vmatpush1.bf16.msra.mxu0 0
    %1071 = vmatprep.subr.bf16.mxu0 0
    %1072 = vmatpush1.bf16.msra.mxu0 0
    %1073 = vmatprep.subr.bf16.mxu0 0
    %1074 = vmatpush1.bf16.msra.mxu0 0
    %1075 = vmatprep.subr.bf16.mxu0 0
    %1076 = vmatpush1.bf16.msra.mxu0 0
    %1077 = vmatprep.subr.bf16.mxu0 0
    %1078 = vmatpush1.bf16.msra.mxu0 0
    %1079 = vmatprep.subr.bf16.mxu0 0
    %1080 = vmatpush1.bf16.msra.mxu0 0
    %1081 = vmatprep.subr.bf16.mxu0 0
    %1082 = vmatpush1.bf16.msra.mxu0 0
    %1083 = vmatprep.subr.bf16.mxu0 0
    %1084 = vmatpush1.bf16.msra.mxu0 0
    %1085 = vmatprep.mubr.bf16.mxu0 0
    %1086 = vmatmul.mubr.bf16.gmra.mrb[0].mxu0 %v1051
    %v1087 = vpop.f32.mrb[0].mxu0
    %v1088 = vadd.f32 0.0, %v1087
    %v1089 = vpop.f32.mrb[0].mxu0
    %v1090 = vpop.f32.mrb[0].mxu0
    %v1091 = vadd.f32 0.0, %v1090
    %v1092 = vpop.f32.mrb[0].mxu0
    %1093 = vdwg.mxu0
    %v1094 = vld [vmem:[#allocation2] sm:$0x1]
    %v1096 = vlaneseq
    %v1097 = vshrl.u32 %v1096, 7
    %v1098 = vsub.s32 0, %v1097
    %v1099 = vrot.slane %v1094, %v1098
    %v1101 = vadd.f32 %v1088, %v1099
    %v1102 = vmax.f32 %v1101, 0.0
    %vm1103 = vcmp.ne.f32.partialorder %v1101, %v1101
    %v1104 = vadd.f32 %v1101, 0.0
    %v1105 = vand.u32 2147483647, %v1101
    %v1106 = vsub.f32 0.0, %v1105
    %v1107 = vmul.f32 %v1106, 1.442695
    %v1108 = vpow.pop %v1107
    %v1109 = vadd.f32 %v1108, 1.0
    %v1110 = vlog2.pop %v1109
    %v1111 = vmul.f32 %v1110, 0.6931472
    %v1112 = vmul.f32 -0.5, %v1108
    %v1113 = vadd.f32 %v1112, 1.0
    %v1114 = vmul.f32 %v1113, %v1108
    %v1115 = vand.u32 2147483647, %v1108
    %vm1116 = vcmp.lt.f32.partialorder %v1115, 0.0004427343
    %v1117 = vsel %vm1116, %v1114, %v1111
    %v1118 = vadd.f32 %v1102, %v1117
    %v1119 = vsel %vm1103, %v1104, %v1118
    %v1120 = vxor.u32 %v1101, 2147483648
    %v1121 = vmul.f32 %v1120, 1.442695
    %v1122 = vpow.pop %v1121
    %v1123 = vadd.f32 %v1122, 1.0
    %v1124 = vrcp.pop %v1123
    %v1125 = vmul.f32 1.0, %v1124
    %v1126 = vmul.f32 %v1125, %v1091
    %v1127 = vmax.f32 %v1119, 0.0
    %vm1128 = vcmp.ne.f32.partialorder %v1119, %v1119
    %v1129 = vadd.f32 %v1119, 0.0
    %v1130 = vand.u32 2147483647, %v1119
    %v1131 = vsub.f32 0.0, %v1130
    %v1132 = vmul.f32 %v1131, 1.442695
    %v1133 = vpow.pop %v1132
    %v1134 = vadd.f32 %v1133, 1.0
    %v1135 = vlog2.pop %v1134
    %v1136 = vmul.f32 %v1135, 0.6931472
    %v1137 = vmul.f32 -0.5, %v1133
    %v1138 = vadd.f32 %v1137, 1.0
    %v1139 = vmul.f32 %v1138, %v1133
    %v1140 = vand.u32 2147483647, %v1133
    %vm1141 = vcmp.lt.f32.partialorder %v1140, 0.0004427343
    %v1142 = vsel %vm1141, %v1139, %v1136
    %v1143 = vadd.f32 %v1127, %v1142
    %v1144 = vsel %vm1128, %v1129, %v1143
    %v1145 = vxor.u32 %v1119, 2147483648
    %v1146 = vmul.f32 %v1145, 1.442695
    %v1147 = vpow.pop %v1146
    %v1148 = vadd.f32 %v1147, 1.0
    %v1149 = vrcp.pop %v1148
    %v1150 = vmul.f32 1.0, %v1149
    %v1151 = vmul.f32 %v1150, %v1126
    %vm1152 = vcmp.lt.s32.totalorder %v115, 2
    %v1153 = vsel %vm1152, %v1144, 0.0
    %vm1154 = vcmask 7168
    %v1155 = vsel %vm1154, %v1153, 0.0
    %1156 = vadd.xlane.f32.xlu0 %v1155
    %v1157 = vpop.xlane.xlu0 %1156
    %v1158 = vrot.slane %v1157, 4
    %v1159 = vadd.f32 %v1157, %v1158
    %v1160 = vrot.slane %v1159, 2
    %v1161 = vadd.f32 %v1159, %v1160
    %v1162 = vrot.slane %v1161, 1
    %v1163 = vadd.f32 %v1161, %v1162
    %s1164 = vtos %v1163
    %v1165 = vstv %s1164
    %v1166 = vmul.f32 %v1165, 0.5
    %v1167 = vmul.f32 %v1151, 0.5
    %v1168 = vadd.f32 %v1167, 1e-10
    %v1169 = vlog2.pop %v1168
    %v1170 = vmul.f32 %v1169, 0.6931472
    %v1171 = vsel %vm1152, %v1170, 0.0
    %v1172 = vsel %vm1154, %v1171, 0.0
    %1173 = vadd.xlane.f32.xlu0 %v1172
    %v1174 = vpop.xlane.xlu0 %1173
    %v1175 = vrot.slane %v1174, 4
    %v1176 = vadd.f32 %v1174, %v1175
    %v1177 = vrot.slane %v1176, 2
    %v1178 = vadd.f32 %v1176, %v1177
    %v1179 = vrot.slane %v1178, 1
    %v1180 = vadd.f32 %v1178, %v1179
    %s1181 = vtos %v1180
    %v1182 = vstv %s1181
    %v1183 = vmul.f32 %v1182, 0.5
    %v1184 = vsub.f32 %v1166, %v1183
    %vm1185 = vcmp.eq.s32.totalorder %v115, 2
    %v1186 = vsel %vm1185, %v1166, 0.0
    %v1187 = vsel %vm141, %v1183, %v1186
    %v1188 = vsel %vm126, %v1184, %v1187
    %vm1189 = vcmp.eq.s32.totalorder %v113, 0
    %vm1190 = vcmp.eq.s32.totalorder %v113, 1
    %v1191 = vsel %vm1190, %v1188, 0.0
    %1193 = vset.pattern.permute.xlu0 0
    %1194 = vperm.xlu0 %1193, %v1167
    %v1195 = vpop.permute.xlu0 %1194
    %v1197 = vsel %vm1189, %v1195, %v1191
    %1198 = vst [vmem:[#allocation14] sm:$0xff] %v1197
    // Predicated region
    $region74: #{tpu_custom_call.1} parent=1 // pred_check
      _
    $region75: #{tpu_custom_call.1} parent=1 // pred_check_branch
      %1200 = sbr.rel (0) target = $region77
    $region76: #{tpu_custom_call.1} parent=1 // pred_region
      %s1202 = ssub.s32 128, 128
      %1203 = vsyncadd [#allocation5], %s1202
      %s1205 = sshll.u32 [#allocation14], 4
      %s1206 = int_to_ptr.vmem [resolvable:$true] %s1205
      %1208 = dma.vmem_to_hbm [thread:$0]  %s1206, 128, %s13, [#allocation5]
    $region77: #{tpu_custom_call.1} parent=1 // pred_fallthru
      _
    // Predicated region
    $region78: #{tpu_custom_call.1} parent=1 // pred_check
      _
    $region79: #{tpu_custom_call.1} parent=1 // pred_check_branch
      %1210 = sbr.rel (0) target = $region81
    $region80: #{tpu_custom_call.1} parent=1 // pred_region
      %1211 = dma.done [#allocation5], 128
    $region81: #{tpu_custom_call.1} parent=1 // pred_fallthru
      _
    %1212 = vsyncpa [#allocation4], 1
    %1213 = vsyncpa [#allocation12], 1
    %1214 = vsyncpa [#allocation5], 1
    %1215 = vsyncpa [#allocation6], 1
    %1216 = vsyncpa [#allocation9], 1
    %1217 = vsyncpa [#allocation7], 1

</llo_original>
